<compile_context>
chip_gen: v7x
topology: tpu7x:2x2x1
jax: 0.10.0
libtpu: 0.0.40
codegen_flags: <defaults>
</compile_context>

<pallas_src>
from functools import partial

import jax
import jax.numpy as jnp
from jax.experimental import pallas as pl
from jax.experimental.pallas import tpu as pltpu


# ----------------------------------------------------------------------------------
# Kernel
# ----------------------------------------------------------------------------------
def _double_conv_kernel(x_ref, bw1_ref, bw2_ref, p_ref, q_ref, out_ref, *, H, eps):
    NB = x_ref.shape[0]                 # images handled by this grid step
    WC = out_ref.shape[2]               # W * Cout (lane-dense output width)
    M = NB * H                          # matmul M dimension (rows)
    mxu_dtype = bw1_ref.dtype

    # Constant operands (constant index_map -> fetched once across the whole grid).
    q = q_ref[...]                      # (WC, WC) f32 group-averaging matrix
    p = p_ref[...]                      # (8, WC) f32 packed per-channel params
    b1, g1, be1 = p[0:1], p[1:2], p[2:3]
    b2, g2, be2 = p[3:4], p[4:5], p[5:6]

    # Row index within each image: masks the pad=1 height border after the sublane
    # roll (rows that wrapped across image boundaries land on the border and are
    # zeroed by the same mask).
    hidx = jax.lax.broadcasted_iota(jnp.int32, (M, 1), 0) % H

    def conv3x3(a3, bw, bias):
        # a3 : (NB, H, L) activations in MXU dtype, lane index = w*cin + ci.
        # bw : (3*L, WC) banded weights -- width taps and pad=1 folded in.
        # One MXU matmul per conv; the height taps are sublane-rolled copies
        # concatenated on the lane axis (im2col over dh only).
        L = a3.shape[2]
        a = a3.reshape(M, L)
        up = pltpu.roll(a, shift=1, axis=0)        # x[h-1] at row h (XLU sublane rotate)
        dn = pltpu.roll(a, shift=M - 1, axis=0)    # x[h+1] at row h
        up = jnp.where(hidx == 0, jnp.zeros_like(up), up)       # zero pad row above h=0
        dn = jnp.where(hidx == H - 1, jnp.zeros_like(dn), dn)   # zero pad row below h=H-1
        lhs = jnp.concatenate([up, a, dn], axis=1)               # (M, 3*L)
        y = jnp.dot(lhs, bw, preferred_element_type=jnp.float32)  # (M, WC) f32
        return (y + bias).reshape(NB, H, WC)

    def groupnorm_relu(y, gamma, beta):
        # y: (NB, H, WC) f32.  Two-pass GroupNorm (stats over H, W and the group's
        # channels via the Q matmul, already broadcast in lane layout) + affine + ReLU.
        gmean = jnp.dot(jnp.sum(y, axis=1), q,
                        preferred_element_type=jnp.float32)          # (NB, WC)
        c = y - gmean[:, None, :]
        gvar = jnp.dot(jnp.sum(c * c, axis=1), q,
                       preferred_element_type=jnp.float32)           # (NB, WC)
        inv = jax.lax.rsqrt(gvar + eps)
        return jnp.maximum(c * (inv[:, None, :] * gamma) + beta, 0.0)

    h1 = groupnorm_relu(conv3x3(x_ref[...], bw1_ref[...], b1), g1, be1)
    # NOTE: on the bf16 default path h1 is rounded to bf16 here (MXU operand dtype).
    h2 = groupnorm_relu(conv3x3(h1.astype(mxu_dtype), bw2_ref[...], b2), g2, be2)
    out_ref[...] = h2.astype(out_ref.dtype)          # (NB, H, WC): lane-dense store


# ----------------------------------------------------------------------------------
# Wrapper-side preprocessing helpers
# ----------------------------------------------------------------------------------
def _band_weights(w_hwio, W):
    """Fold the width taps (and pad=1) of a 3x3 HWIO kernel into a banded matrix.

    Returns BW of shape (3*W*cin, W*cout) with
      BW[(dh, wu, ci), (w, co)] = w[dh, wu - w + 1, ci, co]  if 0 <= wu - w + 1 < 3
                                  0                           otherwise
    so that  out[h, w, co] = sum_{dh, wu, ci} x[h+dh-1, wu, ci] * BW[(dh,wu,ci),(w,co)]
    reproduces the padding=1 convolution (out-of-range columns vanish automatically).
    """
    kh, kw, cin, cout = w_hwio.shape
    wu = jnp.arange(W)[:, None]            # source (input) column
    wo = jnp.arange(W)[None, :]            # output column
    dw = wu - wo + (kw // 2)               # kernel tap index, (W, W)
    valid = (dw >= 0) & (dw < kw)
    dw_c = jnp.clip(dw, 0, kw - 1)
    g = w_hwio[:, dw_c, :, :]                               # (kh, W, W, cin, cout)
    g = jnp.where(valid[None, :, :, None, None], g, 0.0)
    g = jnp.transpose(g, (0, 1, 3, 2, 4))                   # (kh, W_src, cin, W_out, cout)
    return g.reshape(kh * W * cin, W * cout)


def _group_avg_matrix(H, W, Cout, num_groups):
    """(WC, WC) f32 matrix: right-multiplying a per-lane H-row-sum by it yields, at every
    lane (w, c), the mean over that channel's GroupNorm group, broadcast over w and the
    group's channels (exactly the layout the kernel needs)."""
    WC = W * Cout
    gs = Cout // num_groups
    gid = (jnp.arange(WC) % Cout) // gs
    same = gid[:, None] == gid[None, :]
    return jnp.where(same, 1.0 / (H * W * gs), 0.0).astype(jnp.float32)


def _auto_batch_block(N, H):
    """Target >=256 matmul rows per grid step (one MXU pass on v6e/v7x, >=128 for v5e)
    while keeping the grid length >= 2 when N allows, so v7x's two TensorCores both get
    work on the 'parallel' batch axis."""
    target = max(1, -(-256 // H))                     # ceil(256 / H)
    divs = [d for d in range(1, N + 1) if N % d == 0]
    fit = [d for d in divs if d <= target]
    nb = max(fit) if fit else 1
    if N // nb < 2:
        alt = [d for d in divs if N // d >= 2]
        if alt:
            nb = max(alt)
    return nb


def _pad_cin(Cin, W):
    """Smallest Cin' >= Cin (capped at 2*Cin) making W*Cin' 128-lane aligned."""
    if (W * Cin) % 128 == 0:
        return Cin
    for c in range(Cin, 2 * Cin + 1):
        if (W * c) % 128 == 0:
            return c
    return Cin


def _vmem_estimate(NB, H, Lin, WC, mxu_bytes, out_bytes):
    M = NB * H
    blocks = 2 * (M * Lin * mxu_bytes + M * WC * out_bytes)          # double-buffered I/O
    weights = 2 * (3 * Lin * WC + 3 * WC * WC) * mxu_bytes           # bw1, bw2
    consts = 2 * (8 * WC + WC * WC) * 4                              # params + Q (f32)
    live = M * (3 * Lin) * mxu_bytes + 6 * M * WC * 4                # lhs + f32 temporaries
    return blocks + weights + consts + live


# ----------------------------------------------------------------------------------
# Public entry points
# ----------------------------------------------------------------------------------
def double_conv2d_nhwc(x_nhwc, w1, b1, g1, be1, w2, b2, g2, be2, *,
                       num_groups=None, batch_block=None,
                       mxu_dtype=jnp.bfloat16, out_dtype=None):
    """x_nhwc: (N, H, W, Cin); weights HWIO (3, 3, Cin/Cout, Cout). Returns (N, H, W, Cout)."""
    N, H, W, Cin = x_nhwc.shape
    Cout = w1.shape[-1]
    if num_groups is None:
        num_groups = Cout // 2            # nn.GroupNorm(out_channels // 2, out_channels)
    assert Cout % num_groups == 0, "Cout must be divisible by num_groups"
    WC = W * Cout
    if out_dtype is None:
        out_dtype = mxu_dtype             # bf16 store by default: halves HBM writeback

    NB = batch_block if batch_block is not None else _auto_batch_block(N, H)
    assert N % NB == 0, "batch must be divisible by batch_block"

    # Lane-dense conv1 operand: zero-pad Cin so W*Cin is 128-lane aligned.  Zero MACs
    # are free here (latency-bound passes) and the DMA / lane-concat become aligned.
    Cin_p = _pad_cin(Cin, W)
    if Cin_p != Cin:
        x_nhwc = jnp.pad(x_nhwc, ((0, 0), (0, 0), (0, 0), (0, Cin_p - Cin)))
        w1 = jnp.pad(w1, ((0, 0), (0, 0), (0, Cin_p - Cin), (0, 0)))
    Lin = W * Cin_p

    xs = x_nhwc.reshape(N, H, Lin).astype(mxu_dtype)                  # lane = w*Cin + ci
    bw1 = _band_weights(w1.astype(jnp.float32), W).astype(mxu_dtype)  # (3*W*Cin,  W*Cout)
    bw2 = _band_weights(w2.astype(jnp.float32), W).astype(mxu_dtype)  # (3*W*Cout, W*Cout)

    # Pack the six per-channel vectors (tiled across W into lane layout: lane = w*Cout+c)
    # into a single sublane-dense (8, WC) f32 block -> one DMA instead of six (1,128)s.
    lane = lambda v: jnp.tile(v.astype(jnp.float32), W)
    params = jnp.stack([lane(b1), lane(g1), lane(be1),
                        lane(b2), lane(g2), lane(be2),
                        jnp.zeros((WC,), jnp.float32),
                        jnp.zeros((WC,), jnp.float32)])               # (8, WC)

    q = _group_avg_matrix(H, W, Cout, num_groups)                     # (WC, WC) f32

    vmem_est = _vmem_estimate(NB, H, Lin, WC,
                              jnp.dtype(mxu_dtype).itemsize,
                              jnp.dtype(out_dtype).itemsize)
    vmem_limit = int(min(max(int(1.5 * vmem_est), 32 * 2**20), 64 * 2**20))

    kernel = partial(_double_conv_kernel, H=H, eps=1e-5)
    const2d = lambda n: (0, 0)

    out = pl.pallas_call(
        kernel,
        out_shape=jax.ShapeDtypeStruct((N, H, WC), out_dtype),
        grid=(N // NB,),
        in_specs=[
            pl.BlockSpec((NB, H, Lin), lambda n: (n, 0, 0)),
            pl.BlockSpec(bw1.shape, const2d),     # constant block -> DMA'd once
            pl.BlockSpec(bw2.shape, const2d),
            pl.BlockSpec((8, WC), const2d),
            pl.BlockSpec((WC, WC), const2d),
        ],
        out_specs=pl.BlockSpec((NB, H, WC), lambda n: (n, 0, 0)),
        compiler_params=pltpu.CompilerParams(
            dimension_semantics=("parallel",),    # batch is embarrassingly parallel
            vmem_limit_bytes=vmem_limit),
    )(xs, bw1, bw2, params, q)

    return out.reshape(N, H, W, Cout)


def double_conv2d(x_nchw, w1, b1, g1, be1, w2, b2, g2, be2, *,
                  num_groups=None, batch_block=None,
                  mxu_dtype=jnp.bfloat16, out_dtype=None):
    """PyTorch-parity entry point: x_nchw (N, Cin, H, W) -> (N, Cout, H, W)."""
    # TODO(synk): channels-last callers should use double_conv2d_nhwc directly and skip
    # these two HBM-round-trip transposes (kept only for NCHW interface parity; the
    # output transpose runs in out_dtype, bf16 by default).
    x_nhwc = jnp.transpose(x_nchw, (0, 2, 3, 1))
    y = double_conv2d_nhwc(x_nhwc, w1, b1, g1, be1, w2, b2, g2, be2,
                           num_groups=num_groups, batch_block=batch_block,
                           mxu_dtype=mxu_dtype, out_dtype=out_dtype)
    return jnp.transpose(y, (0, 3, 1, 2))


# ----------------------------------------------------------------------------------
# Pure-JAX reference (PyTorch semantics, NCHW, f32)
# ----------------------------------------------------------------------------------
def ref_double_conv(x, w1, b1, g1, be1, w2, b2, g2, be2):
    def conv(x, w_hwio, b):
        w = jnp.transpose(w_hwio, (3, 2, 0, 1))  # HWIO -> OIHW
        y = jax.lax.conv_general_dilated(
            x, w, window_strides=(1, 1), padding=((1, 1), (1, 1)),
            dimension_numbers=('NCHW', 'OIHW', 'NCHW'))
        return y + b[None, :, None, None]

    def gn(x, gamma, beta):
        N, C, H, W = x.shape
        G = C // 2
        xr = x.reshape(N, G, C // G, H, W)
        m = xr.mean(axis=(2, 3, 4), keepdims=True)
        v = ((xr - m) ** 2).mean(axis=(2, 3, 4), keepdims=True)
        xn = (xr - m) / jnp.sqrt(v + 1e-5)
        return xn.reshape(N, C, H, W) * gamma[None, :, None, None] + beta[None, :, None, None]

    h = jax.nn.relu(gn(conv(x, w1, b1), g1, be1))
    return jax.nn.relu(gn(conv(h, w2, b2), g2, be2))


if __name__ == "__main__":
    N, Cin, Cout, H, W = 2, 4, 8, 16, 16

    key = jax.random.PRNGKey(0)
    ks = jax.random.split(key, 8)
    x = jax.random.normal(ks[0], (N, Cin, H, W), jnp.float32)

    # Deterministic parameter init (shapes from the module's __init__), weights in HWIO.
    w1 = 0.2 * jax.random.normal(ks[1], (3, 3, Cin, Cout), jnp.float32)
    b1 = 0.1 * jax.random.normal(ks[2], (Cout,), jnp.float32)
    g1 = 1.0 + 0.1 * jax.random.normal(ks[3], (Cout,), jnp.float32)   # GroupNorm weight
    be1 = 0.1 * jax.random.normal(ks[4], (Cout,), jnp.float32)        # GroupNorm bias
    w2 = 0.2 * jax.random.normal(ks[5], (3, 3, Cout, Cout), jnp.float32)
    b2 = 0.1 * jax.random.normal(ks[6], (Cout,), jnp.float32)
    g2 = jnp.ones((Cout,), jnp.float32)
    be2 = jnp.zeros((Cout,), jnp.float32)

    ref = ref_double_conv(x, w1, b1, g1, be1, w2, b2, g2, be2)

    # 1) f32 MXU operands + f32 output: tight check of the banded-matmul / GroupNorm /
    #    roll-mask formulation.
    out_f32 = jax.block_until_ready(
        double_conv2d(x, w1, b1, g1, be1, w2, b2, g2, be2, mxu_dtype=jnp.float32))
    assert out_f32.shape == (N, Cout, H, W)
    err_f32 = float(jnp.max(jnp.abs(out_f32 - ref)))
    assert err_f32 < 1e-3, f"f32 path max abs err = {err_f32}"

    # 2) Default perf path: bf16 MXU operands and bf16 output (GN/ReLU math stays f32).
    #    Looser tolerance purely from bf16 rounding of matmul inputs and the store.
    out_bf16 = jax.block_until_ready(
        double_conv2d(x, w1, b1, g1, be1, w2, b2, g2, be2))
    assert out_bf16.shape == (N, Cout, H, W)
    err_bf16 = float(jnp.max(jnp.abs(out_bf16.astype(jnp.float32) - ref)))
    assert err_bf16 < 1e-1, f"bf16 path max abs err = {err_bf16}"

    print("KERNEL_OK")
</pallas_src>

<mosaic_0001>
module attributes {stable_mosaic.version = 11 : i64} {
  func.func @_double_conv_kernel(%arg0: i32, %arg1: memref<1x16x128xf32, #tpu.memory_space<vmem>>, %arg2: memref<384x128xf32, #tpu.memory_space<vmem>>, %arg3: memref<384x128xf32, #tpu.memory_space<vmem>>, %arg4: memref<8x128xf32, #tpu.memory_space<vmem>>, %arg5: memref<128x128xf32, #tpu.memory_space<vmem>>, %arg6: memref<1x16x128xf32, #tpu.memory_space<vmem>>) attributes {dimension_semantics = [#tpu.dimension_semantics<parallel>], iteration_bounds = array<i64: 2>, scalar_prefetch = 0 : i64, scratch_operands = 0 : i64, tpu.core_type = #tpu.core_type<tc>, window_params = [{transform_indices = @transform_0, window_bounds = array<i64: 1, 16, 128>}, {pipeline_mode = #tpu.pipeline_mode<synchronous>, transform_indices = @transform_1, window_bounds = array<i64: 384, 128>}, {pipeline_mode = #tpu.pipeline_mode<synchronous>, transform_indices = @transform_2, window_bounds = array<i64: 384, 128>}, {pipeline_mode = #tpu.pipeline_mode<synchronous>, transform_indices = @transform_3, window_bounds = array<i64: 8, 128>}, {pipeline_mode = #tpu.pipeline_mode<synchronous>, transform_indices = @transform_4, window_bounds = array<i64: 128, 128>}, {transform_indices = @transform_5, window_bounds = array<i64: 1, 16, 128>}]} {
    %c0 = arith.constant 0 : index
    %c0_0 = arith.constant 0 : index
    %0 = vector.load %arg5[%c0, %c0_0] : memref<128x128xf32, #tpu.memory_space<vmem>>, vector<128x128xf32>
    %c0_1 = arith.constant 0 : index
    %c0_2 = arith.constant 0 : index
    %1 = vector.load %arg4[%c0_1, %c0_2] : memref<8x128xf32, #tpu.memory_space<vmem>>, vector<8x128xf32>
    %2 = vector.extract_strided_slice %1 {offsets = [0, 0], sizes = [1, 128], strides = [1, 1]} : vector<8x128xf32> to vector<1x128xf32>
    %3 = vector.extract_strided_slice %1 {offsets = [1, 0], sizes = [1, 128], strides = [1, 1]} : vector<8x128xf32> to vector<1x128xf32>
    %4 = vector.extract_strided_slice %1 {offsets = [2, 0], sizes = [1, 128], strides = [1, 1]} : vector<8x128xf32> to vector<1x128xf32>
    %5 = vector.extract_strided_slice %1 {offsets = [3, 0], sizes = [1, 128], strides = [1, 1]} : vector<8x128xf32> to vector<1x128xf32>
    %6 = vector.extract_strided_slice %1 {offsets = [4, 0], sizes = [1, 128], strides = [1, 1]} : vector<8x128xf32> to vector<1x128xf32>
    %7 = vector.extract_strided_slice %1 {offsets = [5, 0], sizes = [1, 128], strides = [1, 1]} : vector<8x128xf32> to vector<1x128xf32>
    %8 = tpu.iota {dimensions = array<i32: 0>} : vector<16x1xi32>
    %c16_i32 = arith.constant 16 : i32
    %c0_i32 = arith.constant 0 : i32
    %9 = arith.cmpi eq, %c16_i32, %c0_i32 : i32
    %c1_i32 = arith.constant 1 : i32
    %10 = arith.select %9, %c1_i32, %c16_i32 : i32
    %11 = vector.broadcast %10 : i32 to vector<16x1xi32>
    %12 = arith.remsi %8, %11 : vector<16x1xi32>
    %c0_i32_3 = arith.constant 0 : i32
    %13 = vector.broadcast %c0_i32_3 : i32 to vector<16x1xi32>
    %14 = arith.cmpi ne, %12, %13 : vector<16x1xi32>
    %c0_i32_4 = arith.constant 0 : i32
    %15 = vector.broadcast %c0_i32_4 : i32 to vector<16x1xi32>
    %16 = arith.cmpi slt, %12, %15 : vector<16x1xi32>
    %c0_i32_5 = arith.constant 0 : i32
    %17 = arith.cmpi slt, %10, %c0_i32_5 : i32
    %18 = vector.broadcast %17 : i1 to vector<16x1xi1>
    %19 = vector.broadcast %18 : vector<16x1xi1> to vector<16x1xi1>
    %20 = arith.xori %16, %19 : vector<16x1xi1>
    %21 = arith.andi %20, %14 : vector<16x1xi1>
    %22 = vector.broadcast %10 : i32 to vector<16x1xi32>
    %23 = arith.addi %12, %22 : vector<16x1xi32>
    %24 = arith.select %21, %23, %12 : vector<16x1xi1>, vector<16x1xi32>
    %c0_6 = arith.constant 0 : index
    %c0_7 = arith.constant 0 : index
    %c0_8 = arith.constant 0 : index
    %25 = vector.load %arg1[%c0_6, %c0_7, %c0_8] : memref<1x16x128xf32, #tpu.memory_space<vmem>>, vector<1x16x128xf32>
    %c0_9 = arith.constant 0 : index
    %c0_10 = arith.constant 0 : index
    %26 = vector.load %arg2[%c0_9, %c0_10] : memref<384x128xf32, #tpu.memory_space<vmem>>, vector<384x128xf32>
    %27 = vector.shape_cast %25 : vector<1x16x128xf32> to vector<16x128xf32>
    %c1_i32_11 = arith.constant 1 : i32
    %28 = tpu.dynamic_rotate %27 by %c1_i32_11 dim 0 : vector<16x128xf32>, i32 -> vector<16x128xf32>
    %c15_i32 = arith.constant 15 : i32
    %29 = tpu.dynamic_rotate %27 by %c15_i32 dim 0 : vector<16x128xf32>, i32 -> vector<16x128xf32>
    %c0_i32_12 = arith.constant 0 : i32
    %30 = vector.broadcast %c0_i32_12 : i32 to vector<16x1xi32>
    %31 = arith.cmpi eq, %24, %30 : vector<16x1xi32>
    %cst = arith.constant 0.000000e+00 : f32
    %32 = vector.broadcast %cst : f32 to vector<16x128xf32>
    %33 = vector.shape_cast %31 : vector<16x1xi1> to vector<16x1xi1>
    %34 = vector.broadcast %33 : vector<16x1xi1> to vector<16x128xi1>
    %35 = arith.select %34, %32, %28 : vector<16x128xi1>, vector<16x128xf32>
    %c15_i32_13 = arith.constant 15 : i32
    %36 = vector.broadcast %c15_i32_13 : i32 to vector<16x1xi32>
    %37 = arith.cmpi eq, %24, %36 : vector<16x1xi32>
    %cst_14 = arith.constant 0.000000e+00 : f32
    %38 = vector.broadcast %cst_14 : f32 to vector<16x128xf32>
    %39 = vector.shape_cast %37 : vector<16x1xi1> to vector<16x1xi1>
    %40 = vector.broadcast %39 : vector<16x1xi1> to vector<16x128xi1>
    %41 = arith.select %40, %38, %29 : vector<16x128xi1>, vector<16x128xf32>
    %42 = tpu.concatenate %35, %27, %41 in 1 : vector<16x128xf32>, vector<16x128xf32>, vector<16x128xf32> -> vector<16x384xf32>
    %cst_15 = arith.constant dense<0.000000e+00> : vector<16x128xf32>
    %43 = tpu.matmul %42, %26, %cst_15 {dimension_numbers = #tpu.dot_dimension_numbers<[1], [0], [0], [1], [0, 0, 1, 1], [], []>} : vector<16x384xf32>, vector<384x128xf32>, vector<16x128xf32> -> vector<16x128xf32>
    %44 = vector.broadcast %2 : vector<1x128xf32> to vector<16x128xf32>
    %45 = arith.addf %43, %44 : vector<16x128xf32>
    %46 = vector.shape_cast %45 : vector<16x128xf32> to vector<1x16x128xf32>
    %cst_16 = arith.constant dense<0.000000e+00> : vector<1x128xf32>
    %47 = vector.multi_reduction <add>, %46, %cst_16 [1] : vector<1x16x128xf32> to vector<1x128xf32>
    %cst_17 = arith.constant dense<0.000000e+00> : vector<1x128xf32>
    %48 = tpu.matmul %47, %0, %cst_17 {dimension_numbers = #tpu.dot_dimension_numbers<[1], [0], [0], [1], [0, 0, 1, 1], [], []>} : vector<1x128xf32>, vector<128x128xf32>, vector<1x128xf32> -> vector<1x128xf32>
    %49 = vector.shape_cast %48 : vector<1x128xf32> to vector<1x1x128xf32>
    %50 = vector.broadcast %49 : vector<1x1x128xf32> to vector<1x16x128xf32>
    %51 = arith.subf %46, %50 : vector<1x16x128xf32>
    %52 = arith.mulf %51, %51 : vector<1x16x128xf32>
    %cst_18 = arith.constant dense<0.000000e+00> : vector<1x128xf32>
    %53 = vector.multi_reduction <add>, %52, %cst_18 [1] : vector<1x16x128xf32> to vector<1x128xf32>
    %cst_19 = arith.constant dense<0.000000e+00> : vector<1x128xf32>
    %54 = tpu.matmul %53, %0, %cst_19 {dimension_numbers = #tpu.dot_dimension_numbers<[1], [0], [0], [1], [0, 0, 1, 1], [], []>} : vector<1x128xf32>, vector<128x128xf32>, vector<1x128xf32> -> vector<1x128xf32>
    %cst_20 = arith.constant 9.99999974E-6 : f32
    %55 = vector.broadcast %cst_20 : f32 to vector<1x128xf32>
    %56 = arith.addf %54, %55 : vector<1x128xf32>
    %57 = math.rsqrt %56 : vector<1x128xf32>
    %58 = vector.shape_cast %57 : vector<1x128xf32> to vector<1x1x128xf32>
    %59 = vector.shape_cast %3 : vector<1x128xf32> to vector<1x1x128xf32>
    %60 = arith.mulf %58, %59 : vector<1x1x128xf32>
    %61 = vector.broadcast %60 : vector<1x1x128xf32> to vector<1x16x128xf32>
    %62 = arith.mulf %51, %61 : vector<1x16x128xf32>
    %63 = vector.shape_cast %4 : vector<1x128xf32> to vector<1x1x128xf32>
    %64 = vector.broadcast %63 : vector<1x1x128xf32> to vector<1x16x128xf32>
    %65 = arith.addf %62, %64 : vector<1x16x128xf32>
    %cst_21 = arith.constant 0.000000e+00 : f32
    %66 = vector.broadcast %cst_21 : f32 to vector<1x16x128xf32>
    %67 = arith.maximumf %65, %66 : vector<1x16x128xf32>
    %c0_22 = arith.constant 0 : index
    %c0_23 = arith.constant 0 : index
    %68 = vector.load %arg3[%c0_22, %c0_23] : memref<384x128xf32, #tpu.memory_space<vmem>>, vector<384x128xf32>
    %69 = vector.shape_cast %67 : vector<1x16x128xf32> to vector<16x128xf32>
    %c1_i32_24 = arith.constant 1 : i32
    %70 = tpu.dynamic_rotate %69 by %c1_i32_24 dim 0 : vector<16x128xf32>, i32 -> vector<16x128xf32>
    %c15_i32_25 = arith.constant 15 : i32
    %71 = tpu.dynamic_rotate %69 by %c15_i32_25 dim 0 : vector<16x128xf32>, i32 -> vector<16x128xf32>
    %c0_i32_26 = arith.constant 0 : i32
    %72 = vector.broadcast %c0_i32_26 : i32 to vector<16x1xi32>
    %73 = arith.cmpi eq, %24, %72 : vector<16x1xi32>
    %cst_27 = arith.constant 0.000000e+00 : f32
    %74 = vector.broadcast %cst_27 : f32 to vector<16x128xf32>
    %75 = vector.shape_cast %73 : vector<16x1xi1> to vector<16x1xi1>
    %76 = vector.broadcast %75 : vector<16x1xi1> to vector<16x128xi1>
    %77 = arith.select %76, %74, %70 : vector<16x128xi1>, vector<16x128xf32>
    %c15_i32_28 = arith.constant 15 : i32
    %78 = vector.broadcast %c15_i32_28 : i32 to vector<16x1xi32>
    %79 = arith.cmpi eq, %24, %78 : vector<16x1xi32>
    %cst_29 = arith.constant 0.000000e+00 : f32
    %80 = vector.broadcast %cst_29 : f32 to vector<16x128xf32>
    %81 = vector.shape_cast %79 : vector<16x1xi1> to vector<16x1xi1>
    %82 = vector.broadcast %81 : vector<16x1xi1> to vector<16x128xi1>
    %83 = arith.select %82, %80, %71 : vector<16x128xi1>, vector<16x128xf32>
    %84 = tpu.concatenate %77, %69, %83 in 1 : vector<16x128xf32>, vector<16x128xf32>, vector<16x128xf32> -> vector<16x384xf32>
    %cst_30 = arith.constant dense<0.000000e+00> : vector<16x128xf32>
    %85 = tpu.matmul %84, %68, %cst_30 {dimension_numbers = #tpu.dot_dimension_numbers<[1], [0], [0], [1], [0, 0, 1, 1], [], []>} : vector<16x384xf32>, vector<384x128xf32>, vector<16x128xf32> -> vector<16x128xf32>
    %86 = vector.broadcast %5 : vector<1x128xf32> to vector<16x128xf32>
    %87 = arith.addf %85, %86 : vector<16x128xf32>
    %88 = vector.shape_cast %87 : vector<16x128xf32> to vector<1x16x128xf32>
    %cst_31 = arith.constant dense<0.000000e+00> : vector<1x128xf32>
    %89 = vector.multi_reduction <add>, %88, %cst_31 [1] : vector<1x16x128xf32> to vector<1x128xf32>
    %cst_32 = arith.constant dense<0.000000e+00> : vector<1x128xf32>
    %90 = tpu.matmul %89, %0, %cst_32 {dimension_numbers = #tpu.dot_dimension_numbers<[1], [0], [0], [1], [0, 0, 1, 1], [], []>} : vector<1x128xf32>, vector<128x128xf32>, vector<1x128xf32> -> vector<1x128xf32>
    %91 = vector.shape_cast %90 : vector<1x128xf32> to vector<1x1x128xf32>
    %92 = vector.broadcast %91 : vector<1x1x128xf32> to vector<1x16x128xf32>
    %93 = arith.subf %88, %92 : vector<1x16x128xf32>
    %94 = arith.mulf %93, %93 : vector<1x16x128xf32>
    %cst_33 = arith.constant dense<0.000000e+00> : vector<1x128xf32>
    %95 = vector.multi_reduction <add>, %94, %cst_33 [1] : vector<1x16x128xf32> to vector<1x128xf32>
    %cst_34 = arith.constant dense<0.000000e+00> : vector<1x128xf32>
    %96 = tpu.matmul %95, %0, %cst_34 {dimension_numbers = #tpu.dot_dimension_numbers<[1], [0], [0], [1], [0, 0, 1, 1], [], []>} : vector<1x128xf32>, vector<128x128xf32>, vector<1x128xf32> -> vector<1x128xf32>
    %cst_35 = arith.constant 9.99999974E-6 : f32
    %97 = vector.broadcast %cst_35 : f32 to vector<1x128xf32>
    %98 = arith.addf %96, %97 : vector<1x128xf32>
    %99 = math.rsqrt %98 : vector<1x128xf32>
    %100 = vector.shape_cast %99 : vector<1x128xf32> to vector<1x1x128xf32>
    %101 = vector.shape_cast %6 : vector<1x128xf32> to vector<1x1x128xf32>
    %102 = arith.mulf %100, %101 : vector<1x1x128xf32>
    %103 = vector.broadcast %102 : vector<1x1x128xf32> to vector<1x16x128xf32>
    %104 = arith.mulf %93, %103 : vector<1x16x128xf32>
    %105 = vector.shape_cast %7 : vector<1x128xf32> to vector<1x1x128xf32>
    %106 = vector.broadcast %105 : vector<1x1x128xf32> to vector<1x16x128xf32>
    %107 = arith.addf %104, %106 : vector<1x16x128xf32>
    %cst_36 = arith.constant 0.000000e+00 : f32
    %108 = vector.broadcast %cst_36 : f32 to vector<1x16x128xf32>
    %109 = arith.maximumf %107, %108 : vector<1x16x128xf32>
    %c0_37 = arith.constant 0 : index
    %c0_38 = arith.constant 0 : index
    %c0_39 = arith.constant 0 : index
    %110 = vector.load %arg6[%c0_37, %c0_38, %c0_39] : memref<1x16x128xf32, #tpu.memory_space<vmem>>, vector<1x16x128xf32>
    tpu.vector_store %arg6[%c0_37, %c0_38, %c0_39], %109 {strides = array<i32>} : memref<1x16x128xf32, #tpu.memory_space<vmem>>, vector<1x16x128xf32>,
    return
  }
  func.func @transform_0(%arg0: i32) -> (i32, i32, i32) {
    %c0_i32 = arith.constant 0 : i32
    %c0_i32_0 = arith.constant 0 : i32
    %c0_i32_1 = arith.constant 0 : i32
    return %arg0, %c0_i32, %c0_i32_0 : i32, i32, i32
  }
  func.func @transform_1(%arg0: i32) -> (i32, i32) {
    %c0_i32 = arith.constant 0 : i32
    %c0_i32_0 = arith.constant 0 : i32
    %c0_i32_1 = arith.constant 0 : i32
    return %c0_i32, %c0_i32_0 : i32, i32
  }
  func.func @transform_2(%arg0: i32) -> (i32, i32) {
    %c0_i32 = arith.constant 0 : i32
    %c0_i32_0 = arith.constant 0 : i32
    %c0_i32_1 = arith.constant 0 : i32
    return %c0_i32, %c0_i32_0 : i32, i32
  }
  func.func @transform_3(%arg0: i32) -> (i32, i32) {
    %c0_i32 = arith.constant 0 : i32
    %c0_i32_0 = arith.constant 0 : i32
    %c0_i32_1 = arith.constant 0 : i32
    return %c0_i32, %c0_i32_0 : i32, i32
  }
  func.func @transform_4(%arg0: i32) -> (i32, i32) {
    %c0_i32 = arith.constant 0 : i32
    %c0_i32_0 = arith.constant 0 : i32
    %c0_i32_1 = arith.constant 0 : i32
    return %c0_i32, %c0_i32_0 : i32, i32
  }
  func.func @transform_5(%arg0: i32) -> (i32, i32, i32) {
    %c0_i32 = arith.constant 0 : i32
    %c0_i32_0 = arith.constant 0 : i32
    %c0_i32_1 = arith.constant 0 : i32
    return %arg0, %c0_i32, %c0_i32_0 : i32, i32, i32
  }
}

</mosaic_0001>

<llo_original>
// kernel: tpu_custom_call.1
$region0: #{tpu_custom_call.1}
  #allocation0 [shape = 'u32[]', space=smem, size = 0x4, offset = 0x4, fixed_abs, tag = 'smem constant byte address 0x4 - core index']
  #allocation1 [shape = 'u32[144,128]{1,0:T(1,128)}', space=vmem, size = 0x12000, scoped, tag = 'internal scratch']
  %s0 = inlined_call_operand.hbm [shape: f32[2,16,128], index: 0, kind: input, shape index: {}]
  %s1 = inlined_call_operand.hbm [shape: f32[384,128], index: 1, kind: input, shape index: {}]
  %s2 = inlined_call_operand.hbm [shape: f32[384,128], index: 2, kind: input, shape index: {}]
  %s3 = inlined_call_operand.vmem [shape: f32[8,128], index: 3, kind: input, shape index: {}]
  %s4 = inlined_call_operand.hbm [shape: f32[128,128], index: 4, kind: input, shape index: {}]
  %s5 = inlined_call_operand.hbm [shape: f32[2,16,128], index: 5, kind: output, shape index: {}]
  %s6 = sld [smem:[#allocation0]]
  $region69: #{tpu_custom_call.1} parent=0
    _
  %s8 = ssub.s32 1, %s6
  %s9 = scalar_select 0, %s8, %s6
  $region1: #{tpu_custom_call.1} parent=0
    #allocation2 [shape = 'u8[16384]{0}', space=vmem, size = 0x4000, scoped, tag = 'input window, operand 0']
    #allocation3 [shape = 's32[2]{0}', space=sflag, size = 0x8, scoped, tag = 'scoped memory for tpu_custom_call.1']
    #allocation4 [shape = 's32[2]{0}', space=sflag, size = 0x8, scoped, tag = 'scoped memory for tpu_custom_call.1']
    #allocation5 [shape = 'u8[196608]{0}', space=vmem, size = 0x30000, scoped, tag = 'input window, operand 1, single buffered']
    #allocation6 [shape = 's32[1]{0}', space=sflag, size = 0x4, scoped, tag = 'scoped memory for tpu_custom_call.1']
    #allocation7 [shape = 'u8[196608]{0}', space=vmem, size = 0x30000, scoped, tag = 'input window, operand 2, single buffered']
    #allocation8 [shape = 'u8[65536]{0}', space=vmem, size = 0x10000, scoped, tag = 'input window, operand 4, single buffered']
    #allocation9 [shape = 's32[1]{0}', space=sflag, size = 0x4, scoped, tag = 'scoped memory for tpu_custom_call.1']
    #allocation10 [shape = 'u8[16384]{0}', space=vmem, size = 0x4000, scoped, tag = 'output window, operand 0']
    %10 = vsyncpa [#allocation3], 0
    %s11 = scalar_lea.sflag [#allocation3], 1
    %12 = vsyncpa %s11, 0
    %13 = vsyncpa [#allocation6], 0
    %14 = vsyncpa [#allocation9], 0
    %15 = vsyncpa [#allocation4], 0
    %s16 = scalar_lea.sflag [#allocation4], 1
    %17 = vsyncpa %s16, 0
    loop: start=0, step=1, limit=4
    $region2: #{tpu_custom_call.1} parent=1 // loop_pre_header
      _
    $region3: #{tpu_custom_call.1} parent=1 // loop_header
      %s19 = sphi 0, %s23
      %p20 = scmp.ge.s32.totalorder %s19, 4
      %s29 = sphi 0, %s31
      %s32 = sphi 0, %s29
      %s33 = sphi 0, %s32
      %s49 = sphi 0, %s33
      %s53 = sphi 0, %s53
      %s55 = sphi 0, %s53
      %s56 = sphi 0, %s55
      %s70 = sphi 0, %s56
      %s74 = sphi 0, %s74
      %s76 = sphi 0, %s74
      %s77 = sphi 0, %s76
      %s91 = sphi 0, %s77
      %s95 = sphi 0, %s95
      %s97 = sphi 0, %s95
      %s98 = sphi 0, %s97
      %s112 = sphi 0, %s98
      %s116 = sphi 0, %s116
      %s118 = sphi 0, %s116
      %s119 = sphi 0, %s118
      %s133 = sphi 0, %s119
      %s139 = sphi 0, %s141
      %s142 = sphi 0, %s139
      %s143 = sphi 0, %s142
      %s159 = sphi 0, %s143
    $region4: #{tpu_custom_call.1} parent=1 // loop_header_branch
      %22 = sbr.rel (%p20) target = $region8
    $region5: #{tpu_custom_call.1} parent=1 // loop_body
      %s24 = ssub.s32 %s19, 1
      %s25 = ssub.s32 %s19, 2
      %s26 = sadd.s32 %s19, 1
      %s27 = ssub.s32 %s19, %s26
      %p28 = scmp.eq.s32.totalorder %s27, 0
      %s30 = sadd.s32 %s29, 1
      %s31 = scalar_select %p28, %s29, %s30
      %p34 = pneg %p28
      %p35 = scmp.eq.s32.totalorder %s19, 1
      %p36 = por %p34, %p35
      %p37 = scmp.ne.s32.totalorder %s29, %s32
      %p38 = scmp.eq.s32.totalorder %s19, 0
      %p39 = por %p37, %p38
      %p40 = scmp.ne.s32.totalorder %s29, %s32
      %p41 = scmp.eq.s32.totalorder %s24, 1
      %p42 = por %p40, %p41
      %p43 = scmp.ne.s32.totalorder %s32, %s33
      %p44 = scmp.eq.s32.totalorder %s24, 0
      %p45 = por %p43, %p44
      %p46 = scmp.ne.s32.totalorder %s32, %s33
      %p47 = scmp.eq.s32.totalorder %s25, 1
      %p48 = por %p46, %p47
      %p50 = scmp.ne.s32.totalorder %s33, %s49
      %p51 = scmp.eq.s32.totalorder %s25, 0
      %p52 = por %p50, %p51
      %s54 = sadd.s32 %s53, 1
      %p57 = scmp.eq.s32.totalorder %s19, 1
      %p58 = scmp.ne.s32.totalorder %s53, %s55
      %p59 = scmp.eq.s32.totalorder %s19, 0
      %p60 = por %p58, %p59
      %p61 = scmp.ne.s32.totalorder %s53, %s55
      %p62 = scmp.eq.s32.totalorder %s24, 1
      %p63 = por %p61, %p62
      %p64 = scmp.ne.s32.totalorder %s55, %s56
      %p65 = scmp.eq.s32.totalorder %s24, 0
      %p66 = por %p64, %p65
      %p67 = scmp.ne.s32.totalorder %s55, %s56
      %p68 = scmp.eq.s32.totalorder %s25, 1
      %p69 = por %p67, %p68
      %p71 = scmp.ne.s32.totalorder %s56, %s70
      %p72 = scmp.eq.s32.totalorder %s25, 0
      %p73 = por %p71, %p72
      %s75 = sadd.s32 %s74, 1
      %p78 = scmp.eq.s32.totalorder %s19, 1
      %p79 = scmp.ne.s32.totalorder %s74, %s76
      %p80 = scmp.eq.s32.totalorder %s19, 0
      %p81 = por %p79, %p80
      %p82 = scmp.ne.s32.totalorder %s74, %s76
      %p83 = scmp.eq.s32.totalorder %s24, 1
      %p84 = por %p82, %p83
      %p85 = scmp.ne.s32.totalorder %s76, %s77
      %p86 = scmp.eq.s32.totalorder %s24, 0
      %p87 = por %p85, %p86
      %p88 = scmp.ne.s32.totalorder %s76, %s77
      %p89 = scmp.eq.s32.totalorder %s25, 1
      %p90 = por %p88, %p89
      %p92 = scmp.ne.s32.totalorder %s77, %s91
      %p93 = scmp.eq.s32.totalorder %s25, 0
      %p94 = por %p92, %p93
      %s96 = sadd.s32 %s95, 1
      %p99 = scmp.eq.s32.totalorder %s19, 1
      %p100 = scmp.ne.s32.totalorder %s95, %s97
      %p101 = scmp.eq.s32.totalorder %s19, 0
      %p102 = por %p100, %p101
      %p103 = scmp.ne.s32.totalorder %s95, %s97
      %p104 = scmp.eq.s32.totalorder %s24, 1
      %p105 = por %p103, %p104
      %p106 = scmp.ne.s32.totalorder %s97, %s98
      %p107 = scmp.eq.s32.totalorder %s24, 0
      %p108 = por %p106, %p107
      %p109 = scmp.ne.s32.totalorder %s97, %s98
      %p110 = scmp.eq.s32.totalorder %s25, 1
      %p111 = por %p109, %p110
      %p113 = scmp.ne.s32.totalorder %s98, %s112
      %p114 = scmp.eq.s32.totalorder %s25, 0
      %p115 = por %p113, %p114
      %s117 = sadd.s32 %s116, 1
      %p120 = scmp.eq.s32.totalorder %s19, 1
      %p121 = scmp.ne.s32.totalorder %s116, %s118
      %p122 = scmp.eq.s32.totalorder %s19, 0
      %p123 = por %p121, %p122
      %p124 = scmp.ne.s32.totalorder %s116, %s118
      %p125 = scmp.eq.s32.totalorder %s24, 1
      %p126 = por %p124, %p125
      %p127 = scmp.ne.s32.totalorder %s118, %s119
      %p128 = scmp.eq.s32.totalorder %s24, 0
      %p129 = por %p127, %p128
      %p130 = scmp.ne.s32.totalorder %s118, %s119
      %p131 = scmp.eq.s32.totalorder %s25, 1
      %p132 = por %p130, %p131
      %p134 = scmp.ne.s32.totalorder %s119, %s133
      %p135 = scmp.eq.s32.totalorder %s25, 0
      %p136 = por %p134, %p135
      %s137 = ssub.s32 %s19, %s26
      %p138 = scmp.eq.s32.totalorder %s137, 0
      %s140 = sadd.s32 %s139, 1
      %s141 = scalar_select %p138, %s139, %s140
      %p144 = pneg %p138
      %p145 = scmp.eq.s32.totalorder %s19, 1
      %p146 = por %p144, %p145
      %p147 = scmp.ne.s32.totalorder %s139, %s142
      %p148 = scmp.eq.s32.totalorder %s19, 0
      %p149 = por %p147, %p148
      %p150 = scmp.ne.s32.totalorder %s139, %s142
      %p151 = scmp.eq.s32.totalorder %s24, 1
      %p152 = por %p150, %p151
      %p153 = scmp.ne.s32.totalorder %s142, %s143
      %p154 = scmp.eq.s32.totalorder %s24, 0
      %p155 = por %p153, %p154
      %p156 = scmp.ne.s32.totalorder %s142, %s143
      %p157 = scmp.eq.s32.totalorder %s25, 1
      %p158 = por %p156, %p157
      %p160 = scmp.ne.s32.totalorder %s143, %s159
      %p161 = scmp.eq.s32.totalorder %s25, 0
      %p162 = por %p160, %p161
      %p163 = scmp.le.s32.totalorder 1, %s19
      %p164 = scmp.lt.s32.totalorder %s19, 3
      %p165 = pnand %p163, %p164
      %p166 = pneg %p165
      // Predicated region
      $region9: #{tpu_custom_call.1} parent=5 // pred_check
        _
      $region10: #{tpu_custom_call.1} parent=5 // pred_check_branch
        %168 = sbr.rel (%p165) target = $region12
      $region11: #{tpu_custom_call.1} parent=5 // pred_region
        %s169 = ssub.s32 %s19, 1
        // Predicated region
        $region13: #{tpu_custom_call.1} parent=11 // pred_check
          %p170 = pneg %p66
        $region14: #{tpu_custom_call.1} parent=11 // pred_check_branch
          %172 = sbr.rel (%p170) target = $region16
        $region15: #{tpu_custom_call.1} parent=11 // pred_region
          %s174 = ssub.s32 6144, 6144
          %175 = vsyncadd [#allocation6], %s174
          %s176 = sshll.u32 [#allocation5], 4
          %s177 = int_to_ptr.vmem [resolvable:$true] %s176
          %182 = dma.hbm_to_vmem [thread:$0]  %s1, 6144, %s177, [#allocation6], 128, 128, 8
        $region16: #{tpu_custom_call.1} parent=11 // pred_fallthru
          _
        // Predicated region
        $region17: #{tpu_custom_call.1} parent=11 // pred_check
          %p183 = pneg %p87
        $region18: #{tpu_custom_call.1} parent=11 // pred_check_branch
          %185 = sbr.rel (%p183) target = $region20
        $region19: #{tpu_custom_call.1} parent=11 // pred_region
          %s187 = ssub.s32 6144, 6144
          %188 = vsyncadd [#allocation6], %s187
          %s189 = sshll.u32 [#allocation7], 4
          %s190 = int_to_ptr.vmem [resolvable:$true] %s189
          %195 = dma.hbm_to_vmem [thread:$0]  %s2, 6144, %s190, [#allocation6], 128, 128, 8
        $region20: #{tpu_custom_call.1} parent=11 // pred_fallthru
          _
        // Predicated region
        $region21: #{tpu_custom_call.1} parent=11 // pred_check
          %p196 = pneg %p108
        $region22: #{tpu_custom_call.1} parent=11 // pred_check_branch
          %198 = sbr.rel (%p196) target = $region24
        $region23: #{tpu_custom_call.1} parent=11 // pred_region
          _
        $region24: #{tpu_custom_call.1} parent=11 // pred_fallthru
          _
        // Predicated region
        $region25: #{tpu_custom_call.1} parent=11 // pred_check
          %p199 = pneg %p129
        $region26: #{tpu_custom_call.1} parent=11 // pred_check_branch
          %201 = sbr.rel (%p199) target = $region28
        $region27: #{tpu_custom_call.1} parent=11 // pred_region
          %s203 = ssub.s32 2048, 2048
          %204 = vsyncadd [#allocation9], %s203
          %s205 = sshll.u32 [#allocation8], 4
          %s206 = int_to_ptr.vmem [resolvable:$true] %s205
          %211 = dma.hbm_to_vmem [thread:$0]  %s4, 2048, %s206, [#allocation9], 128, 128, 8
        $region28: #{tpu_custom_call.1} parent=11 // pred_fallthru
          _
      $region12: #{tpu_custom_call.1} parent=5 // pred_fallthru
        _
      %p212 = scmp.lt.s32.totalorder %s19, 2
      // Predicated region
      $region29: #{tpu_custom_call.1} parent=5 // pred_check
        %p213 = pneg %p212
      $region30: #{tpu_custom_call.1} parent=5 // pred_check_branch
        %215 = sbr.rel (%p213) target = $region32
      $region31: #{tpu_custom_call.1} parent=5 // pred_region
        // Predicated region
        $region33: #{tpu_custom_call.1} parent=31 // pred_check
          %p216 = pneg %p39
        $region34: #{tpu_custom_call.1} parent=31 // pred_check_branch
          %218 = sbr.rel (%p216) target = $region36
        $region35: #{tpu_custom_call.1} parent=31 // pred_region
          %s219 = sand.u32 %s29, 1
          %s220 = scalar_lea.sflag [#allocation3], %s219
          %s221 = sand.u32 %s29, 1
          %s222 = smul.addr %s221, 16
          %s223 = scalar_lea.vmem [#allocation2], %s222
          %s225 = ssub.s32 256, 256
          %226 = vsyncadd %s220, %s225
          %s227 = smul.addr %s19, 2
          %s228 = smul.addr %s227, 128
          %s229 = scalar_lea.hbm %s0, %s228
          %s230 = sshll.u32 %s223, 4
          %s231 = int_to_ptr.vmem [resolvable:$true] %s230
          %236 = dma.hbm_to_vmem [thread:$0]  %s229, 256, %s231, %s220, 128, 128, 8
        $region36: #{tpu_custom_call.1} parent=31 // pred_fallthru
          _
      $region32: #{tpu_custom_call.1} parent=5 // pred_fallthru
        _
      %p237 = scmp.le.s32.totalorder 1, %s19
      %p238 = scmp.lt.s32.totalorder %s19, 3
      %p239 = pnand %p237, %p238
      %p240 = pneg %p239
      // Predicated region
      $region37: #{tpu_custom_call.1} parent=5 // pred_check
        _
      $region38: #{tpu_custom_call.1} parent=5 // pred_check_branch
        %242 = sbr.rel (%p239) target = $region40
      $region39: #{tpu_custom_call.1} parent=5 // pred_region
        %s243 = ssub.s32 %s19, 1
        %s244 = sand.u32 %s32, 1
        %s245 = scalar_lea.sflag [#allocation3], %s244
        %s246 = sand.u32 %s32, 1
        %s247 = smul.addr %s246, 16
        %s248 = scalar_lea.vmem [#allocation2], %s247
        // Predicated region
        $region41: #{tpu_custom_call.1} parent=39 // pred_check
          %p249 = pneg %p45
        $region42: #{tpu_custom_call.1} parent=39 // pred_check_branch
          %251 = sbr.rel (%p249) target = $region44
        $region43: #{tpu_custom_call.1} parent=39 // pred_region
          %252 = dma.done %s245, 256
        $region44: #{tpu_custom_call.1} parent=39 // pred_fallthru
          _
        // Predicated region
        $region45: #{tpu_custom_call.1} parent=39 // pred_check
          %p253 = pneg %p66
        $region46: #{tpu_custom_call.1} parent=39 // pred_check_branch
          %255 = sbr.rel (%p253) target = $region48
        $region47: #{tpu_custom_call.1} parent=39 // pred_region
          %256 = dma.done [#allocation6], 6144
        $region48: #{tpu_custom_call.1} parent=39 // pred_fallthru
          _
        // Predicated region
        $region49: #{tpu_custom_call.1} parent=39 // pred_check
          %p257 = pneg %p87
        $region50: #{tpu_custom_call.1} parent=39 // pred_check_branch
          %259 = sbr.rel (%p257) target = $region52
        $region51: #{tpu_custom_call.1} parent=39 // pred_region
          %260 = dma.done [#allocation6], 6144
        $region52: #{tpu_custom_call.1} parent=39 // pred_fallthru
          _
        // Predicated region
        $region53: #{tpu_custom_call.1} parent=39 // pred_check
          %p261 = pneg %p129
        $region54: #{tpu_custom_call.1} parent=39 // pred_check_branch
          %263 = sbr.rel (%p261) target = $region56
        $region55: #{tpu_custom_call.1} parent=39 // pred_region
          %264 = dma.done [#allocation9], 2048
        $region56: #{tpu_custom_call.1} parent=39 // pred_fallthru
          _
        %s265 = sand.u32 %s32, 1
        %s266 = scalar_lea.sflag [#allocation3], %s265
        %s267 = sand.u32 %s32, 1
        %s268 = smul.addr %s267, 16
        %s269 = scalar_lea.vmem [#allocation2], %s268
        %p270 = pneg %p45
        %p271 = pneg %p42
        %p272 = pneg %p66
        %p273 = pneg %p63
        %p274 = pneg %p87
        %p275 = pneg %p84
        %p276 = pneg %p108
        %p277 = pneg %p105
        %p278 = pneg %p129
        %p279 = pneg %p126
        %p280 = pneg %p155
        %p281 = pneg %p152
        %s282 = sand.u32 %s142, 1
        %s283 = scalar_lea.sflag [#allocation4], %s282
        %s284 = sand.u32 %s142, 1
        %s285 = smul.addr %s284, 16
        %s286 = scalar_lea.vmem [#allocation10], %s285
        %v287 = vld [vmem:[#allocation8] sm:$0xff]
        %v288 = vld [vmem:[#allocation8 + $0x8] sm:$0xff]
        %v289 = vld [vmem:[#allocation8 + $0x10] sm:$0xff]
        %v290 = vld [vmem:[#allocation8 + $0x18] sm:$0xff]
        %v291 = vld [vmem:[#allocation8 + $0x20] sm:$0xff]
        %v292 = vld [vmem:[#allocation8 + $0x28] sm:$0xff]
        %v293 = vld [vmem:[#allocation8 + $0x30] sm:$0xff]
        %v294 = vld [vmem:[#allocation8 + $0x38] sm:$0xff]
        %v295 = vld [vmem:[#allocation8 + $0x40] sm:$0xff]
        %v296 = vld [vmem:[#allocation8 + $0x48] sm:$0xff]
        %v297 = vld [vmem:[#allocation8 + $0x50] sm:$0xff]
        %v298 = vld [vmem:[#allocation8 + $0x58] sm:$0xff]
        %v299 = vld [vmem:[#allocation8 + $0x60] sm:$0xff]
        %v300 = vld [vmem:[#allocation8 + $0x68] sm:$0xff]
        %v301 = vld [vmem:[#allocation8 + $0x70] sm:$0xff]
        %v302 = vld [vmem:[#allocation8 + $0x78] sm:$0xff]
        %v303 = vld [vmem:[%s3] sm:$0xff]
        %v304 = vlaneseq
        %v305 = vshrl.u32 %v304, 7
        %v306 = vadd.s32 %v305, 8
        %vm307 = vcmp.lt.s32.totalorder %v305, 0
        %v308 = vsub.s32 0, %v305
        %v309 = vsel %vm307, %v308, %v305
        %v310 = vshrl.u32 %v309, 4
        %v311 = vand.u32 %v309, 15
        %v312 = vsub.s32 0, %v311
        %v313 = vsel %vm307, %v312, %v311
        %vm314 = vcmp.lt.s32.totalorder %v306, 0
        %v315 = vsub.s32 0, %v306
        %v316 = vsel %vm314, %v315, %v306
        %v317 = vshrl.u32 %v316, 4
        %v318 = vand.u32 %v316, 15
        %v319 = vsub.s32 0, %v318
        %v320 = vsel %vm314, %v319, %v318
        %vm321 = vcmp.ne.s32.totalorder %v313, 0
        %vm322 = vcmp.ne.s32.totalorder %v320, 0
        %vm323 = vcmp.lt.s32.totalorder %v313, 0
        %vm324 = vcmp.lt.s32.totalorder %v320, 0
        %vm325 = vmand %vm323, %vm321
        %vm326 = vmand %vm324, %vm322
        %v327 = vadd.s32 %v313, 16
        %v328 = vadd.s32 %v320, 16
        %v329 = vsel %vm325, %v327, %v313
        %v330 = vsel %vm326, %v328, %v320
        %v331 = vld [vmem:[%s248] sm:$0xff]
        %v332 = vld [vmem:[%s248 + $0x8] sm:$0xff]
        %v333 = vld [vmem:[#allocation5] sm:$0xff]
        %v334 = vld [vmem:[#allocation5 + $0x8] sm:$0xff]
        %v335 = vld [vmem:[#allocation5 + $0x10] sm:$0xff]
        %v336 = vld [vmem:[#allocation5 + $0x18] sm:$0xff]
        %v337 = vld [vmem:[#allocation5 + $0x20] sm:$0xff]
        %v338 = vld [vmem:[#allocation5 + $0x28] sm:$0xff]
        %v339 = vld [vmem:[#allocation5 + $0x30] sm:$0xff]
        %v340 = vld [vmem:[#allocation5 + $0x38] sm:$0xff]
        %v341 = vld [vmem:[#allocation5 + $0x40] sm:$0xff]
        %v342 = vld [vmem:[#allocation5 + $0x48] sm:$0xff]
        %v343 = vld [vmem:[#allocation5 + $0x50] sm:$0xff]
        %v344 = vld [vmem:[#allocation5 + $0x58] sm:$0xff]
        %v345 = vld [vmem:[#allocation5 + $0x60] sm:$0xff]
        %v346 = vld [vmem:[#allocation5 + $0x68] sm:$0xff]
        %v347 = vld [vmem:[#allocation5 + $0x70] sm:$0xff]
        %v348 = vld [vmem:[#allocation5 + $0x78] sm:$0xff]
        %v349 = vld [vmem:[#allocation5 + $0x80] sm:$0xff]
        %v350 = vld [vmem:[#allocation5 + $0x88] sm:$0xff]
        %v351 = vld [vmem:[#allocation5 + $0x90] sm:$0xff]
        %v352 = vld [vmem:[#allocation5 + $0x98] sm:$0xff]
        %v353 = vld [vmem:[#allocation5 + $0xa0] sm:$0xff]
        %v354 = vld [vmem:[#allocation5 + $0xa8] sm:$0xff]
        %v355 = vld [vmem:[#allocation5 + $0xb0] sm:$0xff]
        %v356 = vld [vmem:[#allocation5 + $0xb8] sm:$0xff]
        %v357 = vld [vmem:[#allocation5 + $0xc0] sm:$0xff]
        %v358 = vld [vmem:[#allocation5 + $0xc8] sm:$0xff]
        %v359 = vld [vmem:[#allocation5 + $0xd0] sm:$0xff]
        %v360 = vld [vmem:[#allocation5 + $0xd8] sm:$0xff]
        %v361 = vld [vmem:[#allocation5 + $0xe0] sm:$0xff]
        %v362 = vld [vmem:[#allocation5 + $0xe8] sm:$0xff]
        %v363 = vld [vmem:[#allocation5 + $0xf0] sm:$0xff]
        %v364 = vld [vmem:[#allocation5 + $0xf8] sm:$0xff]
        %v365 = vld [vmem:[#allocation5 + $0x100] sm:$0xff]
        %v366 = vld [vmem:[#allocation5 + $0x108] sm:$0xff]
        %v367 = vld [vmem:[#allocation5 + $0x110] sm:$0xff]
        %v368 = vld [vmem:[#allocation5 + $0x118] sm:$0xff]
        %v369 = vld [vmem:[#allocation5 + $0x120] sm:$0xff]
        %v370 = vld [vmem:[#allocation5 + $0x128] sm:$0xff]
        %v371 = vld [vmem:[#allocation5 + $0x130] sm:$0xff]
        %v372 = vld [vmem:[#allocation5 + $0x138] sm:$0xff]
        %v373 = vld [vmem:[#allocation5 + $0x140] sm:$0xff]
        %v374 = vld [vmem:[#allocation5 + $0x148] sm:$0xff]
        %v375 = vld [vmem:[#allocation5 + $0x150] sm:$0xff]
        %v376 = vld [vmem:[#allocation5 + $0x158] sm:$0xff]
        %v377 = vld [vmem:[#allocation5 + $0x160] sm:$0xff]
        %v378 = vld [vmem:[#allocation5 + $0x168] sm:$0xff]
        %v379 = vld [vmem:[#allocation5 + $0x170] sm:$0xff]
        %v380 = vld [vmem:[#allocation5 + $0x178] sm:$0xff]
        %v381 = vrot.slane %v331, 7
        %v382 = vrot.slane %v332, 7
        %vm383 = vcmp.lt.s32.totalorder %v305, 1
        %v384 = vsel %vm383, %v381, %v382
        %v385 = vsel %vm383, %v382, %v381
        %v386 = vrot.slane %v331, 1
        %v387 = vrot.slane %v332, 1
        %vm388 = vcmp.lt.s32.totalorder %v305, 7
        %v389 = vsel %vm388, %v386, %v387
        %v390 = vsel %vm388, %v387, %v386
        %vm391 = vcmp.eq.s32.totalorder %v329, 0
        %vm392 = vcmp.eq.s32.totalorder %v330, 0
        %v393 = vsel %vm391, 1, 0
        %v394 = vsel %vm392, 1, 0
        %vm395 = vcmp.eq.s32.totalorder %v393, 1
        %vm396 = vcmp.eq.s32.totalorder %v394, 1
        %v397 = vsel %vm395, 0.0, %v385
        %v398 = vsel %vm396, 0.0, %v384
        %vm399 = vcmp.eq.s32.totalorder %v329, 15
        %vm400 = vcmp.eq.s32.totalorder %v330, 15
        %v401 = vsel %vm399, 1, 0
        %v402 = vsel %vm400, 1, 0
        %vm403 = vcmp.eq.s32.totalorder %v401, 1
        %vm404 = vcmp.eq.s32.totalorder %v402, 1
        %v405 = vsel %vm403, 0.0, %v389
        %v406 = vsel %vm404, 0.0, %v390
        %v407 = vlaneseq
        %v408 = vshrl.u32 %v407, 7
        %v409 = vsub.s32 0, %v408
        %v410 = vrot.slane %v303, %v409
        %411 = vmatprep.subr.mxu0 0.0
        %412 = vmatpush1.msra.mxu0 %v333
        %413 = vmatprep.subr.mxu0 0.0
        %414 = vmatpush1.msra.mxu0 %v334
        %415 = vmatprep.subr.mxu0 0.0
        %416 = vmatpush1.msra.mxu0 %v335
        %417 = vmatprep.subr.mxu0 0.0
        %418 = vmatpush1.msra.mxu0 %v336
        %419 = vmatprep.subr.mxu0 0.0
        %420 = vmatpush1.msra.mxu0 %v337
        %421 = vmatprep.subr.mxu0 0.0
        %422 = vmatpush1.msra.mxu0 %v338
        %423 = vmatprep.subr.mxu0 0.0
        %424 = vmatpush1.msra.mxu0 %v339
        %425 = vmatprep.subr.mxu0 0.0
        %426 = vmatpush1.msra.mxu0 %v340
        %427 = vmatprep.subr.mxu0 0.0
        %428 = vmatpush1.msra.mxu0 %v341
        %429 = vmatprep.subr.mxu0 0.0
        %430 = vmatpush1.msra.mxu0 %v342
        %431 = vmatprep.subr.mxu0 0.0
        %432 = vmatpush1.msra.mxu0 %v343
        %433 = vmatprep.subr.mxu0 0.0
        %434 = vmatpush1.msra.mxu0 %v344
        %435 = vmatprep.subr.mxu0 0.0
        %436 = vmatpush1.msra.mxu0 %v345
        %437 = vmatprep.subr.mxu0 0.0
        %438 = vmatpush1.msra.mxu0 %v346
        %439 = vmatprep.subr.mxu0 0.0
        %440 = vmatpush1.msra.mxu0 %v347
        %441 = vmatprep.subr.mxu0 0.0
        %442 = vmatpush1.msra.mxu0 %v348
        %443 = vmatprep.subr.mxu0 0.0
        %444 = vmatpush1.msra.mxu0 %v349
        %445 = vmatprep.subr.mxu0 0.0
        %446 = vmatpush1.msra.mxu0 %v350
        %447 = vmatprep.subr.mxu0 0.0
        %448 = vmatpush1.msra.mxu0 %v351
        %449 = vmatprep.subr.mxu0 0.0
        %450 = vmatpush1.msra.mxu0 %v352
        %451 = vmatprep.subr.mxu0 0.0
        %452 = vmatpush1.msra.mxu0 %v353
        %453 = vmatprep.subr.mxu0 0.0
        %454 = vmatpush1.msra.mxu0 %v354
        %455 = vmatprep.subr.mxu0 0.0
        %456 = vmatpush1.msra.mxu0 %v355
        %457 = vmatprep.subr.mxu0 0.0
        %458 = vmatpush1.msra.mxu0 %v356
        %459 = vmatprep.subr.mxu0 0.0
        %460 = vmatpush1.msra.mxu0 %v357
        %461 = vmatprep.subr.mxu0 0.0
        %462 = vmatpush1.msra.mxu0 %v358
        %463 = vmatprep.subr.mxu0 0.0
        %464 = vmatpush1.msra.mxu0 %v359
        %465 = vmatprep.subr.mxu0 0.0
        %466 = vmatpush1.msra.mxu0 %v360
        %467 = vmatprep.subr.mxu0 0.0
        %468 = vmatpush1.msra.mxu0 %v361
        %469 = vmatprep.subr.mxu0 0.0
        %470 = vmatpush1.msra.mxu0 %v362
        %471 = vmatprep.subr.mxu0 0.0
        %472 = vmatpush1.msra.mxu0 %v363
        %473 = vmatprep.subr.mxu0 0.0
        %474 = vmatpush1.msra.mxu0 %v364
        %475 = vmatprep.mubr.f32.mxu0 %v331
        %476 = vmatmul.mubr.f32.gmra.mrb[0].mxu0 %v397
        %v477 = vpop.f32.mrb[0].mxu0
        %v478 = vadd.f32 %v410, %v477
        %v479 = vpop.f32.mrb[0].mxu0
        %480 = vmatprep.mubr.f32.mxu0 %v332
        %481 = vmatmul.mubr.f32.gmra.mrb[0].mxu0 %v398
        %v482 = vpop.f32.mrb[0].mxu0
        %v483 = vadd.f32 %v410, %v482
        %v484 = vpop.f32.mrb[0].mxu0
        %485 = vdwg.mxu0
        %486 = vmatprep.subr.mxu0 0.0
        %487 = vmatpush1.msra.mxu0 %v365
        %488 = vmatprep.subr.mxu0 0.0
        %489 = vmatpush1.msra.mxu0 %v366
        %490 = vmatprep.subr.mxu0 0.0
        %491 = vmatpush1.msra.mxu0 %v367
        %492 = vmatprep.subr.mxu0 0.0
        %493 = vmatpush1.msra.mxu0 %v368
        %494 = vmatprep.subr.mxu0 0.0
        %495 = vmatpush1.msra.mxu0 %v369
        %496 = vmatprep.subr.mxu0 0.0
        %497 = vmatpush1.msra.mxu0 %v370
        %498 = vmatprep.subr.mxu0 0.0
        %499 = vmatpush1.msra.mxu0 %v371
        %500 = vmatprep.subr.mxu0 0.0
        %501 = vmatpush1.msra.mxu0 %v372
        %502 = vmatprep.subr.mxu0 0.0
        %503 = vmatpush1.msra.mxu0 %v373
        %504 = vmatprep.subr.mxu0 0.0
        %505 = vmatpush1.msra.mxu0 %v374
        %506 = vmatprep.subr.mxu0 0.0
        %507 = vmatpush1.msra.mxu0 %v375
        %508 = vmatprep.subr.mxu0 0.0
        %509 = vmatpush1.msra.mxu0 %v376
        %510 = vmatprep.subr.mxu0 0.0
        %511 = vmatpush1.msra.mxu0 %v377
        %512 = vmatprep.subr.mxu0 0.0
        %513 = vmatpush1.msra.mxu0 %v378
        %514 = vmatprep.subr.mxu0 0.0
        %515 = vmatpush1.msra.mxu0 %v379
        %516 = vmatprep.subr.mxu0 0.0
        %517 = vmatpush1.msra.mxu0 %v380
        %518 = vmatprep.subr.mxu0 0.0
        %519 = vmatpush1.msra.mxu0 0.0
        %520 = vmatprep.subr.mxu0 0.0
        %521 = vmatpush1.msra.mxu0 0.0
        %522 = vmatprep.subr.mxu0 0.0
        %523 = vmatpush1.msra.mxu0 0.0
        %524 = vmatprep.subr.mxu0 0.0
        %525 = vmatpush1.msra.mxu0 0.0
        %526 = vmatprep.subr.mxu0 0.0
        %527 = vmatpush1.msra.mxu0 0.0
        %528 = vmatprep.subr.mxu0 0.0
        %529 = vmatpush1.msra.mxu0 0.0
        %530 = vmatprep.subr.mxu0 0.0
        %531 = vmatpush1.msra.mxu0 0.0
        %532 = vmatprep.subr.mxu0 0.0
        %533 = vmatpush1.msra.mxu0 0.0
        %534 = vmatprep.subr.mxu0 0.0
        %535 = vmatpush1.msra.mxu0 0.0
        %536 = vmatprep.subr.mxu0 0.0
        %537 = vmatpush1.msra.mxu0 0.0
        %538 = vmatprep.subr.mxu0 0.0
        %539 = vmatpush1.msra.mxu0 0.0
        %540 = vmatprep.subr.mxu0 0.0
        %541 = vmatpush1.msra.mxu0 0.0
        %542 = vmatprep.subr.mxu0 0.0
        %543 = vmatpush1.msra.mxu0 0.0
        %544 = vmatprep.subr.mxu0 0.0
        %545 = vmatpush1.msra.mxu0 0.0
        %546 = vmatprep.subr.mxu0 0.0
        %547 = vmatpush1.msra.mxu0 0.0
        %548 = vmatprep.subr.mxu0 0.0
        %549 = vmatpush1.msra.mxu0 0.0
        %550 = vmatprep.mubr.f32.mxu0 0.0
        %551 = vmatmul.mubr.f32.gmra.mrb[0].mxu0 %v405
        %v552 = vpop.f32.mrb[0].mxu0
        %v553 = vadd.f32 %v478, %v552
        %v554 = vpop.f32.mrb[0].mxu0
        %555 = vmatprep.mubr.f32.mxu0 0.0
        %556 = vmatmul.mubr.f32.gmra.mrb[0].mxu0 %v406
        %v557 = vpop.f32.mrb[0].mxu0
        %v558 = vadd.f32 %v483, %v557
        %v559 = vpop.f32.mrb[0].mxu0
        %560 = vdwg.mxu0
        %v561 = vadd.f32 %v553, %v558
        %v562 = vrot.slane %v561, 4
        %v563 = vadd.f32 %v561, %v562
        %v564 = vrot.slane %v563, 2
        %v565 = vadd.f32 %v563, %v564
        %v566 = vrot.slane %v565, 1
        %v567 = vadd.f32 %v565, %v566
        %568 = vmatprep.subr.mxu0 0.0
        %569 = vmatpush1.msra.mxu0 %v287
        %570 = vmatprep.subr.mxu0 0.0
        %571 = vmatpush1.msra.mxu0 %v288
        %572 = vmatprep.subr.mxu0 0.0
        %573 = vmatpush1.msra.mxu0 %v289
        %574 = vmatprep.subr.mxu0 0.0
        %575 = vmatpush1.msra.mxu0 %v290
        %576 = vmatprep.subr.mxu0 0.0
        %577 = vmatpush1.msra.mxu0 %v291
        %578 = vmatprep.subr.mxu0 0.0
        %579 = vmatpush1.msra.mxu0 %v292
        %580 = vmatprep.subr.mxu0 0.0
        %581 = vmatpush1.msra.mxu0 %v293
        %582 = vmatprep.subr.mxu0 0.0
        %583 = vmatpush1.msra.mxu0 %v294
        %584 = vmatprep.subr.mxu0 0.0
        %585 = vmatpush1.msra.mxu0 %v295
        %586 = vmatprep.subr.mxu0 0.0
        %587 = vmatpush1.msra.mxu0 %v296
        %588 = vmatprep.subr.mxu0 0.0
        %589 = vmatpush1.msra.mxu0 %v297
        %590 = vmatprep.subr.mxu0 0.0
        %591 = vmatpush1.msra.mxu0 %v298
        %592 = vmatprep.subr.mxu0 0.0
        %593 = vmatpush1.msra.mxu0 %v299
        %594 = vmatprep.subr.mxu0 0.0
        %595 = vmatpush1.msra.mxu0 %v300
        %596 = vmatprep.subr.mxu0 0.0
        %597 = vmatpush1.msra.mxu0 %v301
        %598 = vmatprep.subr.mxu0 0.0
        %599 = vmatpush1.msra.mxu0 %v302
        %600 = vmatprep.subr.mxu0 0.0
        %601 = vmatpush1.msra.mxu0 0.0
        %602 = vmatprep.subr.mxu0 0.0
        %603 = vmatpush1.msra.mxu0 0.0
        %604 = vmatprep.subr.mxu0 0.0
        %605 = vmatpush1.msra.mxu0 0.0
        %606 = vmatprep.subr.mxu0 0.0
        %607 = vmatpush1.msra.mxu0 0.0
        %608 = vmatprep.subr.mxu0 0.0
        %609 = vmatpush1.msra.mxu0 0.0
        %610 = vmatprep.subr.mxu0 0.0
        %611 = vmatpush1.msra.mxu0 0.0
        %612 = vmatprep.subr.mxu0 0.0
        %613 = vmatpush1.msra.mxu0 0.0
        %614 = vmatprep.subr.mxu0 0.0
        %615 = vmatpush1.msra.mxu0 0.0
        %616 = vmatprep.subr.mxu0 0.0
        %617 = vmatpush1.msra.mxu0 0.0
        %618 = vmatprep.subr.mxu0 0.0
        %619 = vmatpush1.msra.mxu0 0.0
        %620 = vmatprep.subr.mxu0 0.0
        %621 = vmatpush1.msra.mxu0 0.0
        %622 = vmatprep.subr.mxu0 0.0
        %623 = vmatpush1.msra.mxu0 0.0
        %624 = vmatprep.subr.mxu0 0.0
        %625 = vmatpush1.msra.mxu0 0.0
        %626 = vmatprep.subr.mxu0 0.0
        %627 = vmatpush1.msra.mxu0 0.0
        %628 = vmatprep.subr.mxu0 0.0
        %629 = vmatpush1.msra.mxu0 0.0
        %630 = vmatprep.subr.mxu0 0.0
        %631 = vmatpush1.msra.mxu0 0.0
        %632 = vmatprep.mubr.f32.mxu0 0.0
        %633 = vmatmul.mubr.f32.gmra.mrb[0].mxu0 %v567
        %v634 = vpop.f32.mrb[0].mxu0
        %v635 = vadd.f32 0.0, %v634
        %v636 = vpop.f32.mrb[0].mxu0
        %637 = vdwg.mxu0
        %v638 = vlaneseq
        %v639 = vshrl.u32 %v638, 7
        %v640 = vsub.s32 0, %v639
        %v641 = vrot.slane %v635, %v640
        %v642 = vsub.f32 %v553, %v641
        %v643 = vsub.f32 %v558, %v641
        %v644 = vmul.f32 %v642, %v642
        %v645 = vmul.f32 %v643, %v643
        %v646 = vadd.f32 %v644, %v645
        %v647 = vrot.slane %v646, 4
        %v648 = vadd.f32 %v646, %v647
        %v649 = vrot.slane %v648, 2
        %v650 = vadd.f32 %v648, %v649
        %v651 = vrot.slane %v650, 1
        %v652 = vadd.f32 %v650, %v651
        %653 = vmatprep.subr.mxu0 0.0
        %654 = vmatpush1.msra.mxu0 %v287
        %655 = vmatprep.subr.mxu0 0.0
        %656 = vmatpush1.msra.mxu0 %v288
        %657 = vmatprep.subr.mxu0 0.0
        %658 = vmatpush1.msra.mxu0 %v289
        %659 = vmatprep.subr.mxu0 0.0
        %660 = vmatpush1.msra.mxu0 %v290
        %661 = vmatprep.subr.mxu0 0.0
        %662 = vmatpush1.msra.mxu0 %v291
        %663 = vmatprep.subr.mxu0 0.0
        %664 = vmatpush1.msra.mxu0 %v292
        %665 = vmatprep.subr.mxu0 0.0
        %666 = vmatpush1.msra.mxu0 %v293
        %667 = vmatprep.subr.mxu0 0.0
        %668 = vmatpush1.msra.mxu0 %v294
        %669 = vmatprep.subr.mxu0 0.0
        %670 = vmatpush1.msra.mxu0 %v295
        %671 = vmatprep.subr.mxu0 0.0
        %672 = vmatpush1.msra.mxu0 %v296
        %673 = vmatprep.subr.mxu0 0.0
        %674 = vmatpush1.msra.mxu0 %v297
        %675 = vmatprep.subr.mxu0 0.0
        %676 = vmatpush1.msra.mxu0 %v298
        %677 = vmatprep.subr.mxu0 0.0
        %678 = vmatpush1.msra.mxu0 %v299
        %679 = vmatprep.subr.mxu0 0.0
        %680 = vmatpush1.msra.mxu0 %v300
        %681 = vmatprep.subr.mxu0 0.0
        %682 = vmatpush1.msra.mxu0 %v301
        %683 = vmatprep.subr.mxu0 0.0
        %684 = vmatpush1.msra.mxu0 %v302
        %685 = vmatprep.subr.mxu0 0.0
        %686 = vmatpush1.msra.mxu0 0.0
        %687 = vmatprep.subr.mxu0 0.0
        %688 = vmatpush1.msra.mxu0 0.0
        %689 = vmatprep.subr.mxu0 0.0
        %690 = vmatpush1.msra.mxu0 0.0
        %691 = vmatprep.subr.mxu0 0.0
        %692 = vmatpush1.msra.mxu0 0.0
        %693 = vmatprep.subr.mxu0 0.0
        %694 = vmatpush1.msra.mxu0 0.0
        %695 = vmatprep.subr.mxu0 0.0
        %696 = vmatpush1.msra.mxu0 0.0
        %697 = vmatprep.subr.mxu0 0.0
        %698 = vmatpush1.msra.mxu0 0.0
        %699 = vmatprep.subr.mxu0 0.0
        %700 = vmatpush1.msra.mxu0 0.0
        %701 = vmatprep.subr.mxu0 0.0
        %702 = vmatpush1.msra.mxu0 0.0
        %703 = vmatprep.subr.mxu0 0.0
        %704 = vmatpush1.msra.mxu0 0.0
        %705 = vmatprep.subr.mxu0 0.0
        %706 = vmatpush1.msra.mxu0 0.0
        %707 = vmatprep.subr.mxu0 0.0
        %708 = vmatpush1.msra.mxu0 0.0
        %709 = vmatprep.subr.mxu0 0.0
        %710 = vmatpush1.msra.mxu0 0.0
        %711 = vmatprep.subr.mxu0 0.0
        %712 = vmatpush1.msra.mxu0 0.0
        %713 = vmatprep.subr.mxu0 0.0
        %714 = vmatpush1.msra.mxu0 0.0
        %715 = vmatprep.subr.mxu0 0.0
        %716 = vmatpush1.msra.mxu0 0.0
        %717 = vmatprep.mubr.f32.mxu0 0.0
        %718 = vmatmul.mubr.f32.gmra.mrb[0].mxu0 %v652
        %v719 = vpop.f32.mrb[0].mxu0
        %v720 = vadd.f32 1e-05, %v719
        %v721 = vpop.f32.mrb[0].mxu0
        %722 = vdwg.mxu0
        %v723 = vrsqrt.pop %v720
        %v725 = vrot.slane %v303, 1
        %v727 = vmul.f32 %v723, %v725
        %v728 = vlaneseq
        %v729 = vshrl.u32 %v728, 7
        %v730 = vsub.s32 0, %v729
        %v731 = vrot.slane %v727, %v730
        %v732 = vmul.f32 %v642, %v731
        %v733 = vmul.f32 %v643, %v731
        %v734 = vlaneseq
        %v735 = vshrl.u32 %v734, 7
        %v736 = vsub.s32 2, %v735
        %v737 = vrot.slane %v303, %v736
        %v738 = vadd.f32 %v732, %v737
        %v739 = vadd.f32 %v733, %v737
        %v740 = vmax.f32 %v738, 0.0
        %v741 = vmax.f32 %v739, 0.0
        %v742 = vld [vmem:[#allocation7] sm:$0xff]
        %v743 = vld [vmem:[#allocation7 + $0x8] sm:$0xff]
        %v744 = vld [vmem:[#allocation7 + $0x10] sm:$0xff]
        %v745 = vld [vmem:[#allocation7 + $0x18] sm:$0xff]
        %v746 = vld [vmem:[#allocation7 + $0x20] sm:$0xff]
        %v747 = vld [vmem:[#allocation7 + $0x28] sm:$0xff]
        %v748 = vld [vmem:[#allocation7 + $0x30] sm:$0xff]
        %v749 = vld [vmem:[#allocation7 + $0x38] sm:$0xff]
        %v750 = vld [vmem:[#allocation7 + $0x40] sm:$0xff]
        %v751 = vld [vmem:[#allocation7 + $0x48] sm:$0xff]
        %v752 = vld [vmem:[#allocation7 + $0x50] sm:$0xff]
        %v753 = vld [vmem:[#allocation7 + $0x58] sm:$0xff]
        %v754 = vld [vmem:[#allocation7 + $0x60] sm:$0xff]
        %v755 = vld [vmem:[#allocation7 + $0x68] sm:$0xff]
        %v756 = vld [vmem:[#allocation7 + $0x70] sm:$0xff]
        %v757 = vld [vmem:[#allocation7 + $0x78] sm:$0xff]
        %v758 = vld [vmem:[#allocation7 + $0x80] sm:$0xff]
        %v759 = vld [vmem:[#allocation7 + $0x88] sm:$0xff]
        %v760 = vld [vmem:[#allocation7 + $0x90] sm:$0xff]
        %v761 = vld [vmem:[#allocation7 + $0x98] sm:$0xff]
        %v762 = vld [vmem:[#allocation7 + $0xa0] sm:$0xff]
        %v763 = vld [vmem:[#allocation7 + $0xa8] sm:$0xff]
        %v764 = vld [vmem:[#allocation7 + $0xb0] sm:$0xff]
        %v765 = vld [vmem:[#allocation7 + $0xb8] sm:$0xff]
        %v766 = vld [vmem:[#allocation7 + $0xc0] sm:$0xff]
        %v767 = vld [vmem:[#allocation7 + $0xc8] sm:$0xff]
        %v768 = vld [vmem:[#allocation7 + $0xd0] sm:$0xff]
        %v769 = vld [vmem:[#allocation7 + $0xd8] sm:$0xff]
        %v770 = vld [vmem:[#allocation7 + $0xe0] sm:$0xff]
        %v771 = vld [vmem:[#allocation7 + $0xe8] sm:$0xff]
        %v772 = vld [vmem:[#allocation7 + $0xf0] sm:$0xff]
        %v773 = vld [vmem:[#allocation7 + $0xf8] sm:$0xff]
        %v774 = vld [vmem:[#allocation7 + $0x100] sm:$0xff]
        %v775 = vld [vmem:[#allocation7 + $0x108] sm:$0xff]
        %v776 = vld [vmem:[#allocation7 + $0x110] sm:$0xff]
        %v777 = vld [vmem:[#allocation7 + $0x118] sm:$0xff]
        %v778 = vld [vmem:[#allocation7 + $0x120] sm:$0xff]
        %v779 = vld [vmem:[#allocation7 + $0x128] sm:$0xff]
        %v780 = vld [vmem:[#allocation7 + $0x130] sm:$0xff]
        %v781 = vld [vmem:[#allocation7 + $0x138] sm:$0xff]
        %v782 = vld [vmem:[#allocation7 + $0x140] sm:$0xff]
        %v783 = vld [vmem:[#allocation7 + $0x148] sm:$0xff]
        %v784 = vld [vmem:[#allocation7 + $0x150] sm:$0xff]
        %v785 = vld [vmem:[#allocation7 + $0x158] sm:$0xff]
        %v786 = vld [vmem:[#allocation7 + $0x160] sm:$0xff]
        %v787 = vld [vmem:[#allocation7 + $0x168] sm:$0xff]
        %v788 = vld [vmem:[#allocation7 + $0x170] sm:$0xff]
        %v789 = vld [vmem:[#allocation7 + $0x178] sm:$0xff]
        %v790 = vrot.slane %v740, 7
        %v791 = vrot.slane %v741, 7
        %v792 = vsel %vm383, %v790, %v791
        %v793 = vsel %vm383, %v791, %v790
        %v794 = vrot.slane %v740, 1
        %v795 = vrot.slane %v741, 1
        %v796 = vsel %vm388, %v794, %v795
        %v797 = vsel %vm388, %v795, %v794
        %v798 = vsel %vm395, 0.0, %v793
        %v799 = vsel %vm396, 0.0, %v792
        %v800 = vsel %vm403, 0.0, %v796
        %v801 = vsel %vm404, 0.0, %v797
        %v802 = vlaneseq
        %v803 = vshrl.u32 %v802, 7
        %v804 = vsub.s32 3, %v803
        %v805 = vrot.slane %v303, %v804
        %806 = vmatprep.subr.mxu0 0.0
        %807 = vmatpush1.msra.mxu0 %v742
        %808 = vmatprep.subr.mxu0 0.0
        %809 = vmatpush1.msra.mxu0 %v743
        %810 = vmatprep.subr.mxu0 0.0
        %811 = vmatpush1.msra.mxu0 %v744
        %812 = vmatprep.subr.mxu0 0.0
        %813 = vmatpush1.msra.mxu0 %v745
        %814 = vmatprep.subr.mxu0 0.0
        %815 = vmatpush1.msra.mxu0 %v746
        %816 = vmatprep.subr.mxu0 0.0
        %817 = vmatpush1.msra.mxu0 %v747
        %818 = vmatprep.subr.mxu0 0.0
        %819 = vmatpush1.msra.mxu0 %v748
        %820 = vmatprep.subr.mxu0 0.0
        %821 = vmatpush1.msra.mxu0 %v749
        %822 = vmatprep.subr.mxu0 0.0
        %823 = vmatpush1.msra.mxu0 %v750
        %824 = vmatprep.subr.mxu0 0.0
        %825 = vmatpush1.msra.mxu0 %v751
        %826 = vmatprep.subr.mxu0 0.0
        %827 = vmatpush1.msra.mxu0 %v752
        %828 = vmatprep.subr.mxu0 0.0
        %829 = vmatpush1.msra.mxu0 %v753
        %830 = vmatprep.subr.mxu0 0.0
        %831 = vmatpush1.msra.mxu0 %v754
        %832 = vmatprep.subr.mxu0 0.0
        %833 = vmatpush1.msra.mxu0 %v755
        %834 = vmatprep.subr.mxu0 0.0
        %835 = vmatpush1.msra.mxu0 %v756
        %836 = vmatprep.subr.mxu0 0.0
        %837 = vmatpush1.msra.mxu0 %v757
        %838 = vmatprep.subr.mxu0 0.0
        %839 = vmatpush1.msra.mxu0 %v758
        %840 = vmatprep.subr.mxu0 0.0
        %841 = vmatpush1.msra.mxu0 %v759
        %842 = vmatprep.subr.mxu0 0.0
        %843 = vmatpush1.msra.mxu0 %v760
        %844 = vmatprep.subr.mxu0 0.0
        %845 = vmatpush1.msra.mxu0 %v761
        %846 = vmatprep.subr.mxu0 0.0
        %847 = vmatpush1.msra.mxu0 %v762
        %848 = vmatprep.subr.mxu0 0.0
        %849 = vmatpush1.msra.mxu0 %v763
        %850 = vmatprep.subr.mxu0 0.0
        %851 = vmatpush1.msra.mxu0 %v764
        %852 = vmatprep.subr.mxu0 0.0
        %853 = vmatpush1.msra.mxu0 %v765
        %854 = vmatprep.subr.mxu0 0.0
        %855 = vmatpush1.msra.mxu0 %v766
        %856 = vmatprep.subr.mxu0 0.0
        %857 = vmatpush1.msra.mxu0 %v767
        %858 = vmatprep.subr.mxu0 0.0
        %859 = vmatpush1.msra.mxu0 %v768
        %860 = vmatprep.subr.mxu0 0.0
        %861 = vmatpush1.msra.mxu0 %v769
        %862 = vmatprep.subr.mxu0 0.0
        %863 = vmatpush1.msra.mxu0 %v770
        %864 = vmatprep.subr.mxu0 0.0
        %865 = vmatpush1.msra.mxu0 %v771
        %866 = vmatprep.subr.mxu0 0.0
        %867 = vmatpush1.msra.mxu0 %v772
        %868 = vmatprep.subr.mxu0 0.0
        %869 = vmatpush1.msra.mxu0 %v773
        %870 = vmatprep.mubr.f32.mxu0 %v740
        %871 = vmatmul.mubr.f32.gmra.mrb[0].mxu0 %v798
        %v872 = vpop.f32.mrb[0].mxu0
        %v873 = vadd.f32 %v805, %v872
        %v874 = vpop.f32.mrb[0].mxu0
        %875 = vmatprep.mubr.f32.mxu0 %v741
        %876 = vmatmul.mubr.f32.gmra.mrb[0].mxu0 %v799
        %v877 = vpop.f32.mrb[0].mxu0
        %v878 = vadd.f32 %v805, %v877
        %v879 = vpop.f32.mrb[0].mxu0
        %880 = vdwg.mxu0
        %881 = vmatprep.subr.mxu0 0.0
        %882 = vmatpush1.msra.mxu0 %v774
        %883 = vmatprep.subr.mxu0 0.0
        %884 = vmatpush1.msra.mxu0 %v775
        %885 = vmatprep.subr.mxu0 0.0
        %886 = vmatpush1.msra.mxu0 %v776
        %887 = vmatprep.subr.mxu0 0.0
        %888 = vmatpush1.msra.mxu0 %v777
        %889 = vmatprep.subr.mxu0 0.0
        %890 = vmatpush1.msra.mxu0 %v778
        %891 = vmatprep.subr.mxu0 0.0
        %892 = vmatpush1.msra.mxu0 %v779
        %893 = vmatprep.subr.mxu0 0.0
        %894 = vmatpush1.msra.mxu0 %v780
        %895 = vmatprep.subr.mxu0 0.0
        %896 = vmatpush1.msra.mxu0 %v781
        %897 = vmatprep.subr.mxu0 0.0
        %898 = vmatpush1.msra.mxu0 %v782
        %899 = vmatprep.subr.mxu0 0.0
        %900 = vmatpush1.msra.mxu0 %v783
        %901 = vmatprep.subr.mxu0 0.0
        %902 = vmatpush1.msra.mxu0 %v784
        %903 = vmatprep.subr.mxu0 0.0
        %904 = vmatpush1.msra.mxu0 %v785
        %905 = vmatprep.subr.mxu0 0.0
        %906 = vmatpush1.msra.mxu0 %v786
        %907 = vmatprep.subr.mxu0 0.0
        %908 = vmatpush1.msra.mxu0 %v787
        %909 = vmatprep.subr.mxu0 0.0
        %910 = vmatpush1.msra.mxu0 %v788
        %911 = vmatprep.subr.mxu0 0.0
        %912 = vmatpush1.msra.mxu0 %v789
        %913 = vmatprep.subr.mxu0 0.0
        %914 = vmatpush1.msra.mxu0 0.0
        %915 = vmatprep.subr.mxu0 0.0
        %916 = vmatpush1.msra.mxu0 0.0
        %917 = vmatprep.subr.mxu0 0.0
        %918 = vmatpush1.msra.mxu0 0.0
        %919 = vmatprep.subr.mxu0 0.0
        %920 = vmatpush1.msra.mxu0 0.0
        %921 = vmatprep.subr.mxu0 0.0
        %922 = vmatpush1.msra.mxu0 0.0
        %923 = vmatprep.subr.mxu0 0.0
        %924 = vmatpush1.msra.mxu0 0.0
        %925 = vmatprep.subr.mxu0 0.0
        %926 = vmatpush1.msra.mxu0 0.0
        %927 = vmatprep.subr.mxu0 0.0
        %928 = vmatpush1.msra.mxu0 0.0
        %929 = vmatprep.subr.mxu0 0.0
        %930 = vmatpush1.msra.mxu0 0.0
        %931 = vmatprep.subr.mxu0 0.0
        %932 = vmatpush1.msra.mxu0 0.0
        %933 = vmatprep.subr.mxu0 0.0
        %934 = vmatpush1.msra.mxu0 0.0
        %935 = vmatprep.subr.mxu0 0.0
        %936 = vmatpush1.msra.mxu0 0.0
        %937 = vmatprep.subr.mxu0 0.0
        %938 = vmatpush1.msra.mxu0 0.0
        %939 = vmatprep.subr.mxu0 0.0
        %940 = vmatpush1.msra.mxu0 0.0
        %941 = vmatprep.subr.mxu0 0.0
        %942 = vmatpush1.msra.mxu0 0.0
        %943 = vmatprep.subr.mxu0 0.0
        %944 = vmatpush1.msra.mxu0 0.0
        %945 = vmatprep.mubr.f32.mxu0 0.0
        %946 = vmatmul.mubr.f32.gmra.mrb[0].mxu0 %v800
        %v947 = vpop.f32.mrb[0].mxu0
        %v948 = vadd.f32 %v873, %v947
        %v949 = vpop.f32.mrb[0].mxu0
        %950 = vmatprep.mubr.f32.mxu0 0.0
        %951 = vmatmul.mubr.f32.gmra.mrb[0].mxu0 %v801
        %v952 = vpop.f32.mrb[0].mxu0
        %v953 = vadd.f32 %v878, %v952
        %v954 = vpop.f32.mrb[0].mxu0
        %955 = vdwg.mxu0
        %v956 = vadd.f32 %v948, %v953
        %v957 = vrot.slane %v956, 4
        %v958 = vadd.f32 %v956, %v957
        %v959 = vrot.slane %v958, 2
        %v960 = vadd.f32 %v958, %v959
        %v961 = vrot.slane %v960, 1
        %v962 = vadd.f32 %v960, %v961
        %963 = vmatprep.subr.mxu0 0.0
        %964 = vmatpush1.msra.mxu0 %v287
        %965 = vmatprep.subr.mxu0 0.0
        %966 = vmatpush1.msra.mxu0 %v288
        %967 = vmatprep.subr.mxu0 0.0
        %968 = vmatpush1.msra.mxu0 %v289
        %969 = vmatprep.subr.mxu0 0.0
        %970 = vmatpush1.msra.mxu0 %v290
        %971 = vmatprep.subr.mxu0 0.0
        %972 = vmatpush1.msra.mxu0 %v291
        %973 = vmatprep.subr.mxu0 0.0
        %974 = vmatpush1.msra.mxu0 %v292
        %975 = vmatprep.subr.mxu0 0.0
        %976 = vmatpush1.msra.mxu0 %v293
        %977 = vmatprep.subr.mxu0 0.0
        %978 = vmatpush1.msra.mxu0 %v294
        %979 = vmatprep.subr.mxu0 0.0
        %980 = vmatpush1.msra.mxu0 %v295
        %981 = vmatprep.subr.mxu0 0.0
        %982 = vmatpush1.msra.mxu0 %v296
        %983 = vmatprep.subr.mxu0 0.0
        %984 = vmatpush1.msra.mxu0 %v297
        %985 = vmatprep.subr.mxu0 0.0
        %986 = vmatpush1.msra.mxu0 %v298
        %987 = vmatprep.subr.mxu0 0.0
        %988 = vmatpush1.msra.mxu0 %v299
        %989 = vmatprep.subr.mxu0 0.0
        %990 = vmatpush1.msra.mxu0 %v300
        %991 = vmatprep.subr.mxu0 0.0
        %992 = vmatpush1.msra.mxu0 %v301
        %993 = vmatprep.subr.mxu0 0.0
        %994 = vmatpush1.msra.mxu0 %v302
        %995 = vmatprep.subr.mxu0 0.0
        %996 = vmatpush1.msra.mxu0 0.0
        %997 = vmatprep.subr.mxu0 0.0
        %998 = vmatpush1.msra.mxu0 0.0
        %999 = vmatprep.subr.mxu0 0.0
        %1000 = vmatpush1.msra.mxu0 0.0
        %1001 = vmatprep.subr.mxu0 0.0
        %1002 = vmatpush1.msra.mxu0 0.0
        %1003 = vmatprep.subr.mxu0 0.0
        %1004 = vmatpush1.msra.mxu0 0.0
        %1005 = vmatprep.subr.mxu0 0.0
        %1006 = vmatpush1.msra.mxu0 0.0
        %1007 = vmatprep.subr.mxu0 0.0
        %1008 = vmatpush1.msra.mxu0 0.0
        %1009 = vmatprep.subr.mxu0 0.0
        %1010 = vmatpush1.msra.mxu0 0.0
        %1011 = vmatprep.subr.mxu0 0.0
        %1012 = vmatpush1.msra.mxu0 0.0
        %1013 = vmatprep.subr.mxu0 0.0
        %1014 = vmatpush1.msra.mxu0 0.0
        %1015 = vmatprep.subr.mxu0 0.0
        %1016 = vmatpush1.msra.mxu0 0.0
        %1017 = vmatprep.subr.mxu0 0.0
        %1018 = vmatpush1.msra.mxu0 0.0
        %1019 = vmatprep.subr.mxu0 0.0
        %1020 = vmatpush1.msra.mxu0 0.0
        %1021 = vmatprep.subr.mxu0 0.0
        %1022 = vmatpush1.msra.mxu0 0.0
        %1023 = vmatprep.subr.mxu0 0.0
        %1024 = vmatpush1.msra.mxu0 0.0
        %1025 = vmatprep.subr.mxu0 0.0
        %1026 = vmatpush1.msra.mxu0 0.0
        %1027 = vmatprep.mubr.f32.mxu0 0.0
        %1028 = vmatmul.mubr.f32.gmra.mrb[0].mxu0 %v962
        %v1029 = vpop.f32.mrb[0].mxu0
        %v1030 = vadd.f32 0.0, %v1029
        %v1031 = vpop.f32.mrb[0].mxu0
        %1032 = vdwg.mxu0
        %v1033 = vlaneseq
        %v1034 = vshrl.u32 %v1033, 7
        %v1035 = vsub.s32 0, %v1034
        %v1036 = vrot.slane %v1030, %v1035
        %v1037 = vsub.f32 %v948, %v1036
        %v1038 = vsub.f32 %v953, %v1036
        %v1039 = vmul.f32 %v1037, %v1037
        %v1040 = vmul.f32 %v1038, %v1038
        %v1041 = vadd.f32 %v1039, %v1040
        %v1042 = vrot.slane %v1041, 4
        %v1043 = vadd.f32 %v1041, %v1042
        %v1044 = vrot.slane %v1043, 2
        %v1045 = vadd.f32 %v1043, %v1044
        %v1046 = vrot.slane %v1045, 1
        %v1047 = vadd.f32 %v1045, %v1046
        %1048 = vmatprep.subr.mxu0 0.0
        %1049 = vmatpush1.msra.mxu0 %v287
        %1050 = vmatprep.subr.mxu0 0.0
        %1051 = vmatpush1.msra.mxu0 %v288
        %1052 = vmatprep.subr.mxu0 0.0
        %1053 = vmatpush1.msra.mxu0 %v289
        %1054 = vmatprep.subr.mxu0 0.0
        %1055 = vmatpush1.msra.mxu0 %v290
        %1056 = vmatprep.subr.mxu0 0.0
        %1057 = vmatpush1.msra.mxu0 %v291
        %1058 = vmatprep.subr.mxu0 0.0
        %1059 = vmatpush1.msra.mxu0 %v292
        %1060 = vmatprep.subr.mxu0 0.0
        %1061 = vmatpush1.msra.mxu0 %v293
        %1062 = vmatprep.subr.mxu0 0.0
        %1063 = vmatpush1.msra.mxu0 %v294
        %1064 = vmatprep.subr.mxu0 0.0
        %1065 = vmatpush1.msra.mxu0 %v295
        %1066 = vmatprep.subr.mxu0 0.0
        %1067 = vmatpush1.msra.mxu0 %v296
        %1068 = vmatprep.subr.mxu0 0.0
        %1069 = vmatpush1.msra.mxu0 %v297
        %1070 = vmatprep.subr.mxu0 0.0
        %1071 = vmatpush1.msra.mxu0 %v298
        %1072 = vmatprep.subr.mxu0 0.0
        %1073 = vmatpush1.msra.mxu0 %v299
        %1074 = vmatprep.subr.mxu0 0.0
        %1075 = vmatpush1.msra.mxu0 %v300
        %1076 = vmatprep.subr.mxu0 0.0
        %1077 = vmatpush1.msra.mxu0 %v301
        %1078 = vmatprep.subr.mxu0 0.0
        %1079 = vmatpush1.msra.mxu0 %v302
        %1080 = vmatprep.subr.mxu0 0.0
        %1081 = vmatpush1.msra.mxu0 0.0
        %1082 = vmatprep.subr.mxu0 0.0
        %1083 = vmatpush1.msra.mxu0 0.0
        %1084 = vmatprep.subr.mxu0 0.0
        %1085 = vmatpush1.msra.mxu0 0.0
        %1086 = vmatprep.subr.mxu0 0.0
        %1087 = vmatpush1.msra.mxu0 0.0
        %1088 = vmatprep.subr.mxu0 0.0
        %1089 = vmatpush1.msra.mxu0 0.0
        %1090 = vmatprep.subr.mxu0 0.0
        %1091 = vmatpush1.msra.mxu0 0.0
        %1092 = vmatprep.subr.mxu0 0.0
        %1093 = vmatpush1.msra.mxu0 0.0
        %1094 = vmatprep.subr.mxu0 0.0
        %1095 = vmatpush1.msra.mxu0 0.0
        %1096 = vmatprep.subr.mxu0 0.0
        %1097 = vmatpush1.msra.mxu0 0.0
        %1098 = vmatprep.subr.mxu0 0.0
        %1099 = vmatpush1.msra.mxu0 0.0
        %1100 = vmatprep.subr.mxu0 0.0
        %1101 = vmatpush1.msra.mxu0 0.0
        %1102 = vmatprep.subr.mxu0 0.0
        %1103 = vmatpush1.msra.mxu0 0.0
        %1104 = vmatprep.subr.mxu0 0.0
        %1105 = vmatpush1.msra.mxu0 0.0
        %1106 = vmatprep.subr.mxu0 0.0
        %1107 = vmatpush1.msra.mxu0 0.0
        %1108 = vmatprep.subr.mxu0 0.0
        %1109 = vmatpush1.msra.mxu0 0.0
        %1110 = vmatprep.subr.mxu0 0.0
        %1111 = vmatpush1.msra.mxu0 0.0
        %1112 = vmatprep.mubr.f32.mxu0 0.0
        %1113 = vmatmul.mubr.f32.gmra.mrb[0].mxu0 %v1047
        %v1114 = vpop.f32.mrb[0].mxu0
        %v1115 = vadd.f32 1e-05, %v1114
        %v1116 = vpop.f32.mrb[0].mxu0
        %1117 = vdwg.mxu0
        %v1118 = vrsqrt.pop %v1115
        %v1119 = vrot.slane %v303, 4
        %v1121 = vmul.f32 %v1118, %v1119
        %v1122 = vlaneseq
        %v1123 = vshrl.u32 %v1122, 7
        %v1124 = vsub.s32 0, %v1123
        %v1125 = vrot.slane %v1121, %v1124
        %v1126 = vmul.f32 %v1037, %v1125
        %v1127 = vmul.f32 %v1038, %v1125
        %v1128 = vlaneseq
        %v1129 = vshrl.u32 %v1128, 7
        %v1130 = vsub.s32 5, %v1129
        %v1131 = vrot.slane %v303, %v1130
        %v1132 = vadd.f32 %v1126, %v1131
        %v1133 = vadd.f32 %v1127, %v1131
        %v1134 = vmax.f32 %v1132, 0.0
        %v1135 = vmax.f32 %v1133, 0.0
        %1136 = vst [vmem:[%s286] sm:$0xff] %v1134
        %1137 = vst [vmem:[%s286 + $0x8] sm:$0xff] %v1135
        %s1138 = sand.u32 %s142, 1
        %s1139 = scalar_lea.sflag [#allocation4], %s1138
        %s1140 = sand.u32 %s142, 1
        %s1141 = smul.addr %s1140, 16
        %s1142 = scalar_lea.vmem [#allocation10], %s1141
        // Predicated region
        $region57: #{tpu_custom_call.1} parent=39 // pred_check
          %p1143 = pneg %p152
        $region58: #{tpu_custom_call.1} parent=39 // pred_check_branch
          %1145 = sbr.rel (%p1143) target = $region60
        $region59: #{tpu_custom_call.1} parent=39 // pred_region
          %s1147 = ssub.s32 256, 256
          %1148 = vsyncadd %s1139, %s1147
          %s1149 = smul.addr %s24, 2
          %s1150 = smul.addr %s1149, 128
          %s1151 = scalar_lea.hbm %s5, %s1150
          %s1152 = sshll.u32 %s1142, 4
          %s1153 = int_to_ptr.vmem [resolvable:$true] %s1152
          %1158 = dma.vmem_to_hbm [thread:$0]  %s1153, 256, %s1151, %s1139, 128, 128, 8
        $region60: #{tpu_custom_call.1} parent=39 // pred_fallthru
          _
      $region40: #{tpu_custom_call.1} parent=5 // pred_fallthru
        _
      %p1159 = scmp.le.s32.totalorder 2, %s19
      // Predicated region
      $region61: #{tpu_custom_call.1} parent=5 // pred_check
        %p1160 = pneg %p1159
      $region62: #{tpu_custom_call.1} parent=5 // pred_check_branch
        %1162 = sbr.rel (%p1160) target = $region64
      $region63: #{tpu_custom_call.1} parent=5 // pred_region
        %s1163 = ssub.s32 %s19, 2
        // Predicated region
        $region65: #{tpu_custom_call.1} parent=63 // pred_check
          %p1164 = pneg %p158
        $region66: #{tpu_custom_call.1} parent=63 // pred_check_branch
          %1166 = sbr.rel (%p1164) target = $region68
        $region67: #{tpu_custom_call.1} parent=63 // pred_region
          %s1167 = sand.u32 %s143, 1
          %s1168 = scalar_lea.sflag [#allocation4], %s1167
          %s1169 = sand.u32 %s143, 1
          %s1170 = smul.addr %s1169, 16
          %s1171 = scalar_lea.vmem [#allocation10], %s1170
          %1172 = dma.done %s1168, 256
        $region68: #{tpu_custom_call.1} parent=63 // pred_fallthru
          _
      $region64: #{tpu_custom_call.1} parent=5 // pred_fallthru
        _
    $region6: #{tpu_custom_call.1} parent=1 // loop_footer
      %s23 = sadd.s32 1, %s19
    $region7: #{tpu_custom_call.1} parent=1 // loop_footer_branch
      %18 = sbr.rel target = $region3
    $region8: #{tpu_custom_call.1} parent=1 // loop_exit
      _
    %1173 = vsyncpa [#allocation3], 1
    %s1174 = scalar_lea.sflag [#allocation3], 1
    %1175 = vsyncpa %s1174, 1
    %1176 = vsyncpa [#allocation6], 1
    %1177 = vsyncpa [#allocation9], 1
    %1178 = vsyncpa [#allocation4], 1
    %s1179 = scalar_lea.sflag [#allocation4], 1
    %1180 = vsyncpa %s1179, 1

</llo_original>
